<compile_context>
chip_gen: v7x
topology: tpu7x:2x2x1
jax: 0.10.0
libtpu: 0.0.40
codegen_flags: <defaults>
</compile_context>

<pallas_src>
import jax
import jax.numpy as jnp
from jax import lax
from jax.experimental import pallas as pl
from jax.experimental.pallas import tpu as pltpu

# ---------------------------------------------------------------------------
# Model dimensions (the wrapped CNN that SWAG.forward delegates to)
# ---------------------------------------------------------------------------
C_IN, H, W = 4, 16, 16
C_OUT, KH, KW = 8, 3, 3
NUM_CLASSES = 10
NC_PAD = 128                 # lane-dense logits width (sliced back to 10 outside)
LANES = W * C_OUT            # 128 : conv-output row width, lanes = (x, c)
K_CONV = W * C_IN            # 64  : per-ky conv contraction, lanes = (x', ci)
K_BAND = KH * K_CONV         # 192 : fused conv contraction, lanes = (ky, x', ci)
CHUNK = 8                    # samples per inner iteration
ROWS_PER_CHUNK = CHUNK * H   # 128 : MXU M per chunk
MAX_BLOCK = 128              # max samples per grid step


# ---------------------------------------------------------------------------
# Fused Pallas kernel: one grid step == one block of B samples
# ---------------------------------------------------------------------------
def _swag_fused_kernel(x_ref, wb_ref, cb_ref, wf_ref, fb_ref, o_ref, feat_ref):
    """Fused conv3x3(pad=1) + bias + ReLU + NCHW-flatten + Linear.

    x_ref   : (1, B*H, K_BAND) bf16  rows ordered (chunk, y, sample-in-chunk);
                                     lanes = (ky, x', ci); vertical padding is
                                     pre-applied, horizontal padding lives in wb.
    wb_ref  : (K_BAND, LANES)  bf16  banded conv weight (ky folded into K)
    cb_ref  : (1, LANES)       f32   conv bias tiled over x  (lanes = (x, c))
    wf_ref  : (H*LANES, NC_PAD) bf16 FC weight with torch NCHW flatten folded in
    fb_ref  : (1, NC_PAD)      f32   FC bias (classes padded to 128)
    o_ref   : (B, NC_PAD)      f32   logits for this block
    feat_ref: (B, H*LANES)     bf16  VMEM scratch: per-sample conv activation
    """
    n_chunks = o_ref.shape[0] // CHUNK

    # ---- conv: one (128, 192) @ (192, 128) MXU matmul per 8-sample chunk ----
    @pl.loop(0, n_chunks)
    def _(c):
        r0 = pl.multiple_of(c * ROWS_PER_CHUNK, ROWS_PER_CHUNK)
        lhs = x_ref[0, pl.ds(r0, ROWS_PER_CHUNK), :]            # (128, 192) bf16
        acc = jnp.dot(lhs, wb_ref[...], preferred_element_type=jnp.float32)
        feat = jnp.maximum(acc + cb_ref[...], 0.0).astype(jnp.bfloat16)  # (128,128)
        # Stage into the lane-dense (B, 2048) activation slab: rows of `feat`
        # are (y, s), so each y is one aligned (8, 128) subtile at lane y*128.
        s0 = pl.multiple_of(c * CHUNK, CHUNK)
        for y in range(H):
            feat_ref[pl.ds(s0, CHUNK), y * LANES:(y + 1) * LANES] = (
                feat[y * CHUNK:(y + 1) * CHUNK, :])

    # ---- FC: single (B, 2048) @ (2048, 128) matmul over the whole block -----
    logits = jnp.dot(feat_ref[...], wf_ref[...], preferred_element_type=jnp.float32)
    o_ref[...] = logits + fb_ref[...]


# ---------------------------------------------------------------------------
# One-time weight rearrangement (cached in SWAGPallas.__init__)
# ---------------------------------------------------------------------------
def _prepare_weights(params):
    conv_w = params["conv.weight"]          # (C_OUT, C_IN, KH, KW) torch layout
    conv_b = params["conv.bias"]            # (C_OUT,)
    fc_w = params["fc.weight"]              # (NUM_CLASSES, C_OUT*H*W) torch layout
    fc_b = params["fc.bias"]                # (NUM_CLASSES,)

    # Banded conv weight with ky folded into K:
    #   WB[ky*64 + x'*C_IN + ci, x*C_OUT + c] = w[c, ci, ky, x'-x+1] if 0<=x'-x+1<KW
    #                                           0 otherwise (horizontal padding)
    xi = jnp.arange(W)
    xo = jnp.arange(W)
    kx = xi[:, None] - xo[None, :] + 1                      # (x', x)
    valid = ((kx >= 0) & (kx < KW)).astype(conv_w.dtype)
    kxc = jnp.clip(kx, 0, KW - 1)
    wt = jnp.transpose(conv_w, (2, 1, 3, 0))                # (ky, ci, kx, c)
    wb = wt[:, :, kxc, :] * valid[None, None, :, :, None]   # (ky, ci, x', x, c)
    wb = jnp.transpose(wb, (0, 2, 1, 3, 4)).reshape(K_BAND, LANES)
    wb = wb.astype(jnp.bfloat16)

    # Conv bias broadcast over x so it aligns with the (x, c) lane layout.
    cb = jnp.tile(conv_b.astype(jnp.float32), W).reshape(1, LANES)

    # FC weight permuted to the conv's (y, x, c) activation layout; this is
    # where the torch NCHW flatten order (idx = c*H*W + y*W + x) is folded in.
    wf = fc_w.reshape(NUM_CLASSES, C_OUT, H, W)             # (j, c, y, x)
    wf = jnp.transpose(wf, (2, 3, 1, 0)).reshape(H * LANES, NUM_CLASSES)
    wf = jnp.pad(wf, ((0, 0), (0, NC_PAD - NUM_CLASSES))).astype(jnp.bfloat16)

    fb = jnp.pad(fc_b.astype(jnp.float32),
                 (0, NC_PAD - NUM_CLASSES)).reshape(1, NC_PAD)
    return wb, cb, wf, fb


# ---------------------------------------------------------------------------
# Per-call activation layout (tiny XLA ops, fused under jit)
# ---------------------------------------------------------------------------
def _choose_block(n):
    """Return (samples_per_block, padded_batch)."""
    n8 = -(-n // CHUNK) * CHUNK
    if n8 <= 2 * CHUNK:                       # tiny batch: single block
        return n8, n8
    if n8 <= 2 * MAX_BLOCK:                   # mid batch: 2 blocks (v7x megacore)
        b = -(-n8 // (2 * CHUNK)) * CHUNK
        return b, 2 * b
    return MAX_BLOCK, -(-n8 // MAX_BLOCK) * MAX_BLOCK


def _prepare_x(x_nchw, block_b, n_pad):
    n = x_nchw.shape[0]
    x = jnp.transpose(x_nchw, (0, 2, 3, 1)).astype(jnp.float32)    # (n, H, W, Ci)
    x = jnp.pad(x, ((0, n_pad - n), (1, 1), (0, 0), (0, 0)))       # (n_pad, H+2, W, Ci)
    # Fold the KH vertical shifts into the lane (K) dimension: lanes=(ky, x', ci).
    bands = [x[:, ky:ky + H].reshape(n_pad, H, K_CONV) for ky in range(KH)]
    xb = jnp.concatenate(bands, axis=-1)                           # (n_pad, H, 192)
    # Per-block row order (chunk, y, sample-in-chunk) so each inner iteration
    # reads one contiguous, 128-row, MXU-aligned LHS slab.
    nb = n_pad // block_b
    xb = xb.reshape(nb, block_b // CHUNK, CHUNK, H, K_BAND)
    xb = xb.transpose(0, 1, 3, 2, 4).reshape(nb, block_b * H, K_BAND)
    return xb.astype(jnp.bfloat16)


@jax.jit
def _forward_impl(x_nchw, wb, cb, wf, fb):
    n = x_nchw.shape[0]
    block_b, n_pad = _choose_block(n)
    nb = n_pad // block_b
    xb = _prepare_x(x_nchw, block_b, n_pad)

    grid_spec = pltpu.PrefetchScalarGridSpec(
        num_scalar_prefetch=0,
        grid=(nb,),
        in_specs=[
            pl.BlockSpec((1, block_b * H, K_BAND), lambda i: (i, 0, 0)),  # x block
            pl.BlockSpec((K_BAND, LANES), lambda i: (0, 0)),              # banded conv w
            pl.BlockSpec((1, LANES), lambda i: (0, 0)),                   # conv bias
            pl.BlockSpec((H * LANES, NC_PAD), lambda i: (0, 0)),          # folded fc w
            pl.BlockSpec((1, NC_PAD), lambda i: (0, 0)),                  # fc bias
        ],
        out_specs=pl.BlockSpec((block_b, NC_PAD), lambda i: (i, 0)),      # lane-dense
        scratch_shapes=[pltpu.VMEM((block_b, H * LANES), jnp.bfloat16)],  # activation
    )
    out = pl.pallas_call(
        _swag_fused_kernel,
        out_shape=jax.ShapeDtypeStruct((n_pad, NC_PAD), jnp.float32),
        grid_spec=grid_spec,
        compiler_params=pltpu.CompilerParams(
            dimension_semantics=("parallel",)),     # blocks split across TCs on v7x
    )(xb, wb, cb, wf, fb)

    return out[:n, :NUM_CLASSES]


# ---------------------------------------------------------------------------
# SWAG wrapper (forward == wrapped model forward)
# ---------------------------------------------------------------------------
class SWAGPallas:
    def __init__(self, params, K=0, var_clamp=1e-30):
        self.K = K
        self.var_clamp = var_clamp
        self.params = params
        # Weight rearrangement is done ONCE here, not on the per-forward path.
        self._packed = _prepare_weights(params)
        # Mirror swag_parameters(): zero-initialized SWAG statistic buffers.
        # They are not consumed by forward() (exactly as in the PyTorch code).
        self.n = jnp.zeros([1], dtype=jnp.int32)
        self.swag_buffers = {}
        for name, p in params.items():
            self.swag_buffers[f"{name}_mean"] = jnp.zeros_like(p)
            self.swag_buffers[f"{name}_sq_mean"] = jnp.zeros_like(p)
            self.swag_buffers[f"{name}_cov_sqrt"] = jnp.zeros((0, p.size), p.dtype)
        self.initialized = False
        # TODO(synk): sample()/collect_model()/save() are host-side statistics
        # bookkeeping outside forward(); not implemented as kernels.

    def forward(self, x_nchw):
        """x_nchw: [N, C_IN, H, W] float32 (PyTorch NCHW convention)."""
        return _forward_impl(x_nchw, *self._packed)

    __call__ = forward


# ---------------------------------------------------------------------------
# Pure-JAX references (correctness sanity checks for the Pallas path)
# ---------------------------------------------------------------------------
def reference_forward(params, x_nchw):
    conv_w, conv_b = params["conv.weight"], params["conv.bias"]
    fc_w, fc_b = params["fc.weight"], params["fc.bias"]
    y = lax.conv_general_dilated(
        x_nchw, conv_w, window_strides=(1, 1), padding="SAME",
        dimension_numbers=("NCHW", "OIHW", "NCHW"))
    y = jnp.maximum(y + conv_b[None, :, None, None], 0.0)
    return y.reshape(y.shape[0], -1) @ fc_w.T + fc_b[None, :]


def reference_forward_matched(params, x_nchw):
    # Mirrors the kernel's rounding: bf16 MXU inputs (x, conv weight, conv
    # activation, fc weight) with f32 accumulation everywhere.
    bf = lambda a: a.astype(jnp.bfloat16).astype(jnp.float32)
    y = lax.conv_general_dilated(
        bf(x_nchw), bf(params["conv.weight"]), window_strides=(1, 1),
        padding="SAME", dimension_numbers=("NCHW", "OIHW", "NCHW"))
    y = jnp.maximum(y + params["conv.bias"][None, :, None, None], 0.0)
    feat = bf(y).reshape(y.shape[0], -1)
    return feat @ bf(params["fc.weight"]).T + params["fc.bias"][None, :]


if __name__ == "__main__":
    key = jax.random.PRNGKey(0)
    k_x, k_cw, k_cb, k_fw, k_fb = jax.random.split(key, 5)

    # Deterministic synthetic parameters (shapes follow the torch layers).
    params = {
        "conv.weight": 0.1 * jax.random.normal(k_cw, (C_OUT, C_IN, KH, KW), jnp.float32),
        "conv.bias":   0.1 * jax.random.normal(k_cb, (C_OUT,), jnp.float32),
        "fc.weight":   0.05 * jax.random.normal(k_fw, (NUM_CLASSES, C_OUT * H * W), jnp.float32),
        "fc.bias":     0.05 * jax.random.normal(k_fb, (NUM_CLASSES,), jnp.float32),
    }
    swag = SWAGPallas(params, K=0)

    # Test 1: tiny batch (single block, single chunk).
    N = 2
    x = jax.random.normal(k_x, (N, C_IN, H, W), jnp.float32)  # NCHW input
    out = jax.block_until_ready(swag(x))
    assert out.shape == (N, NUM_CLASSES)

    ref_m = jax.block_until_ready(reference_forward_matched(params, x))
    assert jnp.allclose(out, ref_m, rtol=5e-3, atol=5e-3), \
        "mismatch vs matched-precision reference (N=2)"
    ref = jax.block_until_ready(reference_forward(params, x))
    assert jnp.allclose(out, ref, rtol=5e-2, atol=5e-2), \
        "mismatch vs f32 reference (N=2)"

    # Test 2: exercises batch padding, multiple 8-sample chunks and grid > 1.
    N2 = 20
    x2 = jax.random.normal(jax.random.PRNGKey(1), (N2, C_IN, H, W), jnp.float32)
    out2 = jax.block_until_ready(swag(x2))
    assert out2.shape == (N2, NUM_CLASSES)
    ref2_m = jax.block_until_ready(reference_forward_matched(params, x2))
    assert jnp.allclose(out2, ref2_m, rtol=5e-3, atol=5e-3), \
        "mismatch vs matched-precision reference (N=20)"
    ref2 = jax.block_until_ready(reference_forward(params, x2))
    assert jnp.allclose(out2, ref2, rtol=5e-2, atol=5e-2), \
        "mismatch vs f32 reference (N=20)"

    print("KERNEL_OK")
</pallas_src>

<mosaic_0001>
module attributes {stable_mosaic.version = 11 : i64} {
  func.func @_swag_fused_kernel(%arg0: i32, %arg1: memref<1x128x192xbf16, #tpu.memory_space<vmem>>, %arg2: memref<192x128xbf16, #tpu.memory_space<vmem>>, %arg3: memref<1x128xf32, #tpu.memory_space<vmem>>, %arg4: memref<2048x128xbf16, #tpu.memory_space<vmem>>, %arg5: memref<1x128xf32, #tpu.memory_space<vmem>>, %arg6: memref<8x128xf32, #tpu.memory_space<vmem>>, %arg7: memref<8x2048xbf16, #tpu.memory_space<vmem>>) attributes {dimension_semantics = [#tpu.dimension_semantics<parallel>], iteration_bounds = array<i64: 1>, scalar_prefetch = 0 : i64, scratch_operands = 1 : i64, tpu.core_type = #tpu.core_type<tc>, window_params = [{transform_indices = @transform_0, window_bounds = array<i64: 1, 128, 192>}, {pipeline_mode = #tpu.pipeline_mode<synchronous>, transform_indices = @transform_1, window_bounds = array<i64: 192, 128>}, {pipeline_mode = #tpu.pipeline_mode<synchronous>, transform_indices = @transform_2, window_bounds = array<i64: 1, 128>}, {pipeline_mode = #tpu.pipeline_mode<synchronous>, transform_indices = @transform_3, window_bounds = array<i64: 2048, 128>}, {pipeline_mode = #tpu.pipeline_mode<synchronous>, transform_indices = @transform_4, window_bounds = array<i64: 1, 128>}, {transform_indices = @transform_5, window_bounds = array<i64: 8, 128>}]} {
    %c0_i32 = arith.constant 0 : i32
    %c1_i32 = arith.constant 1 : i32
    %0 = arith.muli %c0_i32, %c1_i32 : i32
    %c0_i32_0 = arith.constant 0 : i32
    %1 = arith.addi %c0_i32_0, %0 : i32
    %c128_i32 = arith.constant 128 : i32
    %2 = arith.muli %1, %c128_i32 : i32
    %3 = tpu.assume_multiple %2, 128 : i32
    %c0 = arith.constant 0 : index
    %4 = arith.index_cast %3 : i32 to index
    %c0_1 = arith.constant 0 : index
    %5 = vector.load %arg1[%c0, %4, %c0_1] : memref<1x128x192xbf16, #tpu.memory_space<vmem>>, vector<1x128x192xbf16>
    %6 = vector.shape_cast %5 : vector<1x128x192xbf16> to vector<128x192xbf16>
    %c0_2 = arith.constant 0 : index
    %c0_3 = arith.constant 0 : index
    %7 = vector.load %arg2[%c0_2, %c0_3] : memref<192x128xbf16, #tpu.memory_space<vmem>>, vector<192x128xbf16>
    %cst = arith.constant dense<0.000000e+00> : vector<128x128xf32>
    %8 = tpu.matmul %6, %7, %cst {dimension_numbers = #tpu.dot_dimension_numbers<[1], [0], [0], [1], [0, 0, 1, 1], [], []>} : vector<128x192xbf16>, vector<192x128xbf16>, vector<128x128xf32> -> vector<128x128xf32>
    %c0_4 = arith.constant 0 : index
    %c0_5 = arith.constant 0 : index
    %9 = vector.load %arg3[%c0_4, %c0_5] : memref<1x128xf32, #tpu.memory_space<vmem>>, vector<1x128xf32>
    %10 = vector.broadcast %9 : vector<1x128xf32> to vector<128x128xf32>
    %11 = arith.addf %8, %10 : vector<128x128xf32>
    %cst_6 = arith.constant 0.000000e+00 : f32
    %12 = vector.broadcast %cst_6 : f32 to vector<128x128xf32>
    %13 = arith.maximumf %11, %12 : vector<128x128xf32>
    %14 = arith.truncf %13 : vector<128x128xf32> to vector<128x128xbf16>
    %c8_i32 = arith.constant 8 : i32
    %15 = arith.muli %1, %c8_i32 : i32
    %16 = tpu.assume_multiple %15, 8 : i32
    %17 = vector.extract_strided_slice %14 {offsets = [0, 0], sizes = [8, 128], strides = [1, 1]} : vector<128x128xbf16> to vector<8x128xbf16>
    %18 = arith.index_cast %16 : i32 to index
    %c0_7 = arith.constant 0 : index
    %19 = vector.load %arg7[%18, %c0_7] : memref<8x2048xbf16, #tpu.memory_space<vmem>>, vector<8x128xbf16>
    tpu.vector_store %arg7[%18, %c0_7], %17 {strides = array<i32>} : memref<8x2048xbf16, #tpu.memory_space<vmem>>, vector<8x128xbf16>,
    %20 = vector.extract_strided_slice %14 {offsets = [8, 0], sizes = [8, 128], strides = [1, 1]} : vector<128x128xbf16> to vector<8x128xbf16>
    %21 = arith.index_cast %16 : i32 to index
    %c128 = arith.constant 128 : index
    %22 = vector.load %arg7[%21, %c128] : memref<8x2048xbf16, #tpu.memory_space<vmem>>, vector<8x128xbf16>
    tpu.vector_store %arg7[%21, %c128], %20 {strides = array<i32>} : memref<8x2048xbf16, #tpu.memory_space<vmem>>, vector<8x128xbf16>,
    %23 = vector.extract_strided_slice %14 {offsets = [16, 0], sizes = [8, 128], strides = [1, 1]} : vector<128x128xbf16> to vector<8x128xbf16>
    %24 = arith.index_cast %16 : i32 to index
    %c256 = arith.constant 256 : index
    %25 = vector.load %arg7[%24, %c256] : memref<8x2048xbf16, #tpu.memory_space<vmem>>, vector<8x128xbf16>
    tpu.vector_store %arg7[%24, %c256], %23 {strides = array<i32>} : memref<8x2048xbf16, #tpu.memory_space<vmem>>, vector<8x128xbf16>,
    %26 = vector.extract_strided_slice %14 {offsets = [24, 0], sizes = [8, 128], strides = [1, 1]} : vector<128x128xbf16> to vector<8x128xbf16>
    %27 = arith.index_cast %16 : i32 to index
    %c384 = arith.constant 384 : index
    %28 = vector.load %arg7[%27, %c384] : memref<8x2048xbf16, #tpu.memory_space<vmem>>, vector<8x128xbf16>
    tpu.vector_store %arg7[%27, %c384], %26 {strides = array<i32>} : memref<8x2048xbf16, #tpu.memory_space<vmem>>, vector<8x128xbf16>,
    %29 = vector.extract_strided_slice %14 {offsets = [32, 0], sizes = [8, 128], strides = [1, 1]} : vector<128x128xbf16> to vector<8x128xbf16>
    %30 = arith.index_cast %16 : i32 to index
    %c512 = arith.constant 512 : index
    %31 = vector.load %arg7[%30, %c512] : memref<8x2048xbf16, #tpu.memory_space<vmem>>, vector<8x128xbf16>
    tpu.vector_store %arg7[%30, %c512], %29 {strides = array<i32>} : memref<8x2048xbf16, #tpu.memory_space<vmem>>, vector<8x128xbf16>,
    %32 = vector.extract_strided_slice %14 {offsets = [40, 0], sizes = [8, 128], strides = [1, 1]} : vector<128x128xbf16> to vector<8x128xbf16>
    %33 = arith.index_cast %16 : i32 to index
    %c640 = arith.constant 640 : index
    %34 = vector.load %arg7[%33, %c640] : memref<8x2048xbf16, #tpu.memory_space<vmem>>, vector<8x128xbf16>
    tpu.vector_store %arg7[%33, %c640], %32 {strides = array<i32>} : memref<8x2048xbf16, #tpu.memory_space<vmem>>, vector<8x128xbf16>,
    %35 = vector.extract_strided_slice %14 {offsets = [48, 0], sizes = [8, 128], strides = [1, 1]} : vector<128x128xbf16> to vector<8x128xbf16>
    %36 = arith.index_cast %16 : i32 to index
    %c768 = arith.constant 768 : index
    %37 = vector.load %arg7[%36, %c768] : memref<8x2048xbf16, #tpu.memory_space<vmem>>, vector<8x128xbf16>
    tpu.vector_store %arg7[%36, %c768], %35 {strides = array<i32>} : memref<8x2048xbf16, #tpu.memory_space<vmem>>, vector<8x128xbf16>,
    %38 = vector.extract_strided_slice %14 {offsets = [56, 0], sizes = [8, 128], strides = [1, 1]} : vector<128x128xbf16> to vector<8x128xbf16>
    %39 = arith.index_cast %16 : i32 to index
    %c896 = arith.constant 896 : index
    %40 = vector.load %arg7[%39, %c896] : memref<8x2048xbf16, #tpu.memory_space<vmem>>, vector<8x128xbf16>
    tpu.vector_store %arg7[%39, %c896], %38 {strides = array<i32>} : memref<8x2048xbf16, #tpu.memory_space<vmem>>, vector<8x128xbf16>,
    %41 = vector.extract_strided_slice %14 {offsets = [64, 0], sizes = [8, 128], strides = [1, 1]} : vector<128x128xbf16> to vector<8x128xbf16>
    %42 = arith.index_cast %16 : i32 to index
    %c1024 = arith.constant 1024 : index
    %43 = vector.load %arg7[%42, %c1024] : memref<8x2048xbf16, #tpu.memory_space<vmem>>, vector<8x128xbf16>
    tpu.vector_store %arg7[%42, %c1024], %41 {strides = array<i32>} : memref<8x2048xbf16, #tpu.memory_space<vmem>>, vector<8x128xbf16>,
    %44 = vector.extract_strided_slice %14 {offsets = [72, 0], sizes = [8, 128], strides = [1, 1]} : vector<128x128xbf16> to vector<8x128xbf16>
    %45 = arith.index_cast %16 : i32 to index
    %c1152 = arith.constant 1152 : index
    %46 = vector.load %arg7[%45, %c1152] : memref<8x2048xbf16, #tpu.memory_space<vmem>>, vector<8x128xbf16>
    tpu.vector_store %arg7[%45, %c1152], %44 {strides = array<i32>} : memref<8x2048xbf16, #tpu.memory_space<vmem>>, vector<8x128xbf16>,
    %47 = vector.extract_strided_slice %14 {offsets = [80, 0], sizes = [8, 128], strides = [1, 1]} : vector<128x128xbf16> to vector<8x128xbf16>
    %48 = arith.index_cast %16 : i32 to index
    %c1280 = arith.constant 1280 : index
    %49 = vector.load %arg7[%48, %c1280] : memref<8x2048xbf16, #tpu.memory_space<vmem>>, vector<8x128xbf16>
    tpu.vector_store %arg7[%48, %c1280], %47 {strides = array<i32>} : memref<8x2048xbf16, #tpu.memory_space<vmem>>, vector<8x128xbf16>,
    %50 = vector.extract_strided_slice %14 {offsets = [88, 0], sizes = [8, 128], strides = [1, 1]} : vector<128x128xbf16> to vector<8x128xbf16>
    %51 = arith.index_cast %16 : i32 to index
    %c1408 = arith.constant 1408 : index
    %52 = vector.load %arg7[%51, %c1408] : memref<8x2048xbf16, #tpu.memory_space<vmem>>, vector<8x128xbf16>
    tpu.vector_store %arg7[%51, %c1408], %50 {strides = array<i32>} : memref<8x2048xbf16, #tpu.memory_space<vmem>>, vector<8x128xbf16>,
    %53 = vector.extract_strided_slice %14 {offsets = [96, 0], sizes = [8, 128], strides = [1, 1]} : vector<128x128xbf16> to vector<8x128xbf16>
    %54 = arith.index_cast %16 : i32 to index
    %c1536 = arith.constant 1536 : index
    %55 = vector.load %arg7[%54, %c1536] : memref<8x2048xbf16, #tpu.memory_space<vmem>>, vector<8x128xbf16>
    tpu.vector_store %arg7[%54, %c1536], %53 {strides = array<i32>} : memref<8x2048xbf16, #tpu.memory_space<vmem>>, vector<8x128xbf16>,
    %56 = vector.extract_strided_slice %14 {offsets = [104, 0], sizes = [8, 128], strides = [1, 1]} : vector<128x128xbf16> to vector<8x128xbf16>
    %57 = arith.index_cast %16 : i32 to index
    %c1664 = arith.constant 1664 : index
    %58 = vector.load %arg7[%57, %c1664] : memref<8x2048xbf16, #tpu.memory_space<vmem>>, vector<8x128xbf16>
    tpu.vector_store %arg7[%57, %c1664], %56 {strides = array<i32>} : memref<8x2048xbf16, #tpu.memory_space<vmem>>, vector<8x128xbf16>,
    %59 = vector.extract_strided_slice %14 {offsets = [112, 0], sizes = [8, 128], strides = [1, 1]} : vector<128x128xbf16> to vector<8x128xbf16>
    %60 = arith.index_cast %16 : i32 to index
    %c1792 = arith.constant 1792 : index
    %61 = vector.load %arg7[%60, %c1792] : memref<8x2048xbf16, #tpu.memory_space<vmem>>, vector<8x128xbf16>
    tpu.vector_store %arg7[%60, %c1792], %59 {strides = array<i32>} : memref<8x2048xbf16, #tpu.memory_space<vmem>>, vector<8x128xbf16>,
    %62 = vector.extract_strided_slice %14 {offsets = [120, 0], sizes = [8, 128], strides = [1, 1]} : vector<128x128xbf16> to vector<8x128xbf16>
    %63 = arith.index_cast %16 : i32 to index
    %c1920 = arith.constant 1920 : index
    %64 = vector.load %arg7[%63, %c1920] : memref<8x2048xbf16, #tpu.memory_space<vmem>>, vector<8x128xbf16>
    tpu.vector_store %arg7[%63, %c1920], %62 {strides = array<i32>} : memref<8x2048xbf16, #tpu.memory_space<vmem>>, vector<8x128xbf16>,
    %c1_i32_8 = arith.constant 1 : i32
    %c0_9 = arith.constant 0 : index
    %c0_10 = arith.constant 0 : index
    %65 = vector.load %arg7[%c0_9, %c0_10] : memref<8x2048xbf16, #tpu.memory_space<vmem>>, vector<8x2048xbf16>
    %c0_11 = arith.constant 0 : index
    %c0_12 = arith.constant 0 : index
    %66 = vector.load %arg4[%c0_11, %c0_12] : memref<2048x128xbf16, #tpu.memory_space<vmem>>, vector<2048x128xbf16>
    %cst_13 = arith.constant dense<0.000000e+00> : vector<8x128xf32>
    %67 = tpu.matmul %65, %66, %cst_13 {dimension_numbers = #tpu.dot_dimension_numbers<[1], [0], [0], [1], [0, 0, 1, 1], [], []>} : vector<8x2048xbf16>, vector<2048x128xbf16>, vector<8x128xf32> -> vector<8x128xf32>
    %c0_14 = arith.constant 0 : index
    %c0_15 = arith.constant 0 : index
    %68 = vector.load %arg5[%c0_14, %c0_15] : memref<1x128xf32, #tpu.memory_space<vmem>>, vector<1x128xf32>
    %69 = vector.broadcast %68 : vector<1x128xf32> to vector<8x128xf32>
    %70 = arith.addf %67, %69 : vector<8x128xf32>
    %c0_16 = arith.constant 0 : index
    %c0_17 = arith.constant 0 : index
    %71 = vector.load %arg6[%c0_16, %c0_17] : memref<8x128xf32, #tpu.memory_space<vmem>>, vector<8x128xf32>
    tpu.vector_store %arg6[%c0_16, %c0_17], %70 {strides = array<i32>} : memref<8x128xf32, #tpu.memory_space<vmem>>, vector<8x128xf32>,
    return
  }
  func.func @transform_0(%arg0: i32) -> (i32, i32, i32) {
    %c0_i32 = arith.constant 0 : i32
    %c0_i32_0 = arith.constant 0 : i32
    %c0_i32_1 = arith.constant 0 : i32
    return %arg0, %c0_i32, %c0_i32_0 : i32, i32, i32
  }
  func.func @transform_1(%arg0: i32) -> (i32, i32) {
    %c0_i32 = arith.constant 0 : i32
    %c0_i32_0 = arith.constant 0 : i32
    %c0_i32_1 = arith.constant 0 : i32
    return %c0_i32, %c0_i32_0 : i32, i32
  }
  func.func @transform_2(%arg0: i32) -> (i32, i32) {
    %c0_i32 = arith.constant 0 : i32
    %c0_i32_0 = arith.constant 0 : i32
    %c0_i32_1 = arith.constant 0 : i32
    return %c0_i32, %c0_i32_0 : i32, i32
  }
  func.func @transform_3(%arg0: i32) -> (i32, i32) {
    %c0_i32 = arith.constant 0 : i32
    %c0_i32_0 = arith.constant 0 : i32
    %c0_i32_1 = arith.constant 0 : i32
    return %c0_i32, %c0_i32_0 : i32, i32
  }
  func.func @transform_4(%arg0: i32) -> (i32, i32) {
    %c0_i32 = arith.constant 0 : i32
    %c0_i32_0 = arith.constant 0 : i32
    %c0_i32_1 = arith.constant 0 : i32
    return %c0_i32, %c0_i32_0 : i32, i32
  }
  func.func @transform_5(%arg0: i32) -> (i32, i32) {
    %c0_i32 = arith.constant 0 : i32
    %c0_i32_0 = arith.constant 0 : i32
    return %arg0, %c0_i32 : i32, i32
  }
}

</mosaic_0001>

<llo_original>
// kernel: _forward_impl.1
$region0: #{_forward_impl.1}
  #allocation0 [shape = 'u32[]', space=smem, size = 0x4, offset = 0x4, fixed_abs, tag = 'smem constant byte address 0x4 - core index']
  #allocation1 [shape = 'u32[144,128]{1,0:T(1,128)}', space=vmem, size = 0x12000, scoped, tag = 'internal scratch']
  #allocation2 [shape = 'bf16[8,2048]{1,0:T(8,128)(2,1)}', space=vmem, size = 0x8000, scoped, tag = 'scratch operand']
  %s0 = inlined_call_operand.vmem [shape: bf16[1,128,192], index: 0, kind: input, shape index: {}]
  %s1 = inlined_call_operand.vmem [shape: bf16[192,128], index: 1, kind: input, shape index: {}]
  %s2 = inlined_call_operand.vmem [shape: f32[1,128], index: 2, kind: input, shape index: {}]
  %s3 = inlined_call_operand.vmem [shape: bf16[2048,128], index: 3, kind: input, shape index: {}]
  %s4 = inlined_call_operand.vmem [shape: f32[1,128], index: 4, kind: input, shape index: {}]
  %s5 = inlined_call_operand.vmem [shape: f32[8,128], index: 5, kind: output, shape index: {}]
  %s6 = sld [smem:[#allocation0]]
  $region30: #{_forward_impl.1} parent=0
    _
  %s8 = ssub.s32 1, %s6
  %s9 = scalar_select 0, %s8, %s6
  // Predicated region
  $region2: #{_forward_impl.1} parent=0 // pred_check
    _
  $region3: #{_forward_impl.1} parent=0 // pred_check_branch
    %11 = sbr.rel (0) target = $region5
  $region4: #{_forward_impl.1} parent=0 // pred_region
    _
  $region5: #{_forward_impl.1} parent=0 // pred_fallthru
    _
  // Predicated region
  $region6: #{_forward_impl.1} parent=0 // pred_check
    _
  $region7: #{_forward_impl.1} parent=0 // pred_check_branch
    %13 = sbr.rel (0) target = $region9
  $region8: #{_forward_impl.1} parent=0 // pred_region
    _
  $region9: #{_forward_impl.1} parent=0 // pred_fallthru
    _
  // Predicated region
  $region10: #{_forward_impl.1} parent=0 // pred_check
    _
  $region11: #{_forward_impl.1} parent=0 // pred_check_branch
    %15 = sbr.rel (0) target = $region13
  $region12: #{_forward_impl.1} parent=0 // pred_region
    _
  $region13: #{_forward_impl.1} parent=0 // pred_fallthru
    _
  // Predicated region
  $region14: #{_forward_impl.1} parent=0 // pred_check
    _
  $region15: #{_forward_impl.1} parent=0 // pred_check_branch
    %17 = sbr.rel (0) target = $region17
  $region16: #{_forward_impl.1} parent=0 // pred_region
    _
  $region17: #{_forward_impl.1} parent=0 // pred_fallthru
    _
  // Predicated region
  $region18: #{_forward_impl.1} parent=0 // pred_check
    _
  $region19: #{_forward_impl.1} parent=0 // pred_check_branch
    %19 = sbr.rel (0) target = $region21
  $region20: #{_forward_impl.1} parent=0 // pred_region
    _
  $region21: #{_forward_impl.1} parent=0 // pred_fallthru
    _
  %s21 = smul.u32 0, 2
  %s22 = smul.addr %s21, 4
  %s23 = scalar_lea.vmem %s0, %s22
  %v24 = vld [vmem:[%s23] sm:$0xff]
  %v25 = vld [vmem:[%s23 + $0x8] sm:$0xff]
  %v26 = vld [vmem:[%s23 + $0x10] sm:$0xff]
  %v27 = vld [vmem:[%s23 + $0x18] sm:$0xff]
  %v28 = vld [vmem:[%s23 + $0x20] sm:$0xff]
  %v29 = vld [vmem:[%s23 + $0x28] sm:$0xff]
  %v30 = vld [vmem:[%s23 + $0x30] sm:$0xff]
  %v31 = vld [vmem:[%s23 + $0x38] sm:$0xff]
  %v32 = vld [vmem:[%s23 + $0x40] sm:$0xff]
  %v33 = vld [vmem:[%s23 + $0x48] sm:$0xff]
  %v34 = vld [vmem:[%s23 + $0x50] sm:$0xff]
  %v35 = vld [vmem:[%s23 + $0x58] sm:$0xff]
  %v36 = vld [vmem:[%s23 + $0x60] sm:$0xff]
  %v37 = vld [vmem:[%s23 + $0x68] sm:$0xff]
  %v38 = vld [vmem:[%s23 + $0x70] sm:$0xff]
  %v39 = vld [vmem:[%s23 + $0x78] sm:$0xff]
  %v40 = vld [vmem:[%s1] sm:$0xf]
  %v41 = vld [vmem:[%s1 + $0x4] sm:$0xf]
  %v42 = vld [vmem:[%s1 + $0x8] sm:$0xf]
  %v43 = vld [vmem:[%s1 + $0xc] sm:$0xf]
  %v44 = vld [vmem:[%s1 + $0x10] sm:$0xf]
  %v45 = vld [vmem:[%s1 + $0x14] sm:$0xf]
  %v46 = vld [vmem:[%s1 + $0x18] sm:$0xf]
  %v47 = vld [vmem:[%s1 + $0x1c] sm:$0xf]
  %v48 = vld [vmem:[%s1 + $0x20] sm:$0xf]
  %v49 = vld [vmem:[%s1 + $0x24] sm:$0xf]
  %v50 = vld [vmem:[%s1 + $0x28] sm:$0xf]
  %v51 = vld [vmem:[%s1 + $0x2c] sm:$0xf]
  %v52 = vld [vmem:[%s1 + $0x30] sm:$0xf]
  %v53 = vld [vmem:[%s1 + $0x34] sm:$0xf]
  %v54 = vld [vmem:[%s1 + $0x38] sm:$0xf]
  %v55 = vld [vmem:[%s1 + $0x3c] sm:$0xf]
  %v56 = vld [vmem:[%s1 + $0x40] sm:$0xf]
  %v57 = vld [vmem:[%s1 + $0x44] sm:$0xf]
  %v58 = vld [vmem:[%s1 + $0x48] sm:$0xf]
  %v59 = vld [vmem:[%s1 + $0x4c] sm:$0xf]
  %v60 = vld [vmem:[%s1 + $0x50] sm:$0xf]
  %v61 = vld [vmem:[%s1 + $0x54] sm:$0xf]
  %v62 = vld [vmem:[%s1 + $0x58] sm:$0xf]
  %v63 = vld [vmem:[%s1 + $0x5c] sm:$0xf]
  %v64 = vld [vmem:[%s2] sm:$0x1]
  %v66 = vlaneseq
  %v67 = vshrl.u32 %v66, 7
  %v68 = vsub.s32 0, %v67
  %v69 = vrot.slane %v64, %v68
  %v87 = vunpack.c.l.b16 %v24
  %v88 = vunpack.c.h.b16 %v24
  %v89 = vunpack.c.l.b16 %v25
  %v90 = vunpack.c.h.b16 %v25
  %v91 = vunpack.c.l.b16 %v26
  %v92 = vunpack.c.h.b16 %v26
  %v93 = vunpack.c.l.b16 %v27
  %v94 = vunpack.c.h.b16 %v27
  %v95 = vunpack.c.l.b16 %v28
  %v96 = vunpack.c.h.b16 %v28
  %v97 = vunpack.c.l.b16 %v29
  %v98 = vunpack.c.h.b16 %v29
  %v99 = vunpack.c.l.b16 %v30
  %v100 = vunpack.c.h.b16 %v30
  %v101 = vunpack.c.l.b16 %v31
  %v102 = vunpack.c.h.b16 %v31
  %v103 = vunpack.c.l.b16 %v32
  %v104 = vunpack.c.h.b16 %v32
  %v105 = vunpack.c.l.b16 %v33
  %v106 = vunpack.c.h.b16 %v33
  %v107 = vunpack.c.l.b16 %v34
  %v108 = vunpack.c.h.b16 %v34
  %v109 = vunpack.c.l.b16 %v35
  %v110 = vunpack.c.h.b16 %v35
  %v111 = vunpack.c.l.b16 %v36
  %v112 = vunpack.c.h.b16 %v36
  %v113 = vunpack.c.l.b16 %v37
  %v114 = vunpack.c.h.b16 %v37
  %v115 = vunpack.c.l.b16 %v38
  %v116 = vunpack.c.h.b16 %v38
  %v117 = vunpack.c.l.b16 %v39
  %v118 = vunpack.c.h.b16 %v39
  %v119 = vpack.c.b16 %v89, %v87
  %v120 = vpack.c.b16 %v90, %v88
  %v121 = vpack.c.b16 %v93, %v91
  %v122 = vpack.c.b16 %v94, %v92
  %v123 = vpack.c.b16 %v97, %v95
  %v124 = vpack.c.b16 %v98, %v96
  %v125 = vpack.c.b16 %v101, %v99
  %v126 = vpack.c.b16 %v102, %v100
  %v127 = vpack.c.b16 %v105, %v103
  %v128 = vpack.c.b16 %v106, %v104
  %v129 = vpack.c.b16 %v109, %v107
  %v130 = vpack.c.b16 %v110, %v108
  %v131 = vpack.c.b16 %v113, %v111
  %v132 = vpack.c.b16 %v114, %v112
  %v133 = vpack.c.b16 %v117, %v115
  %v134 = vpack.c.b16 %v118, %v116
  %v167 = vunpack.c.l.b16 %v40
  %v168 = vunpack.c.l.b16 %v41
  %v169 = vunpack.c.l.b16 %v42
  %v170 = vunpack.c.l.b16 %v43
  %v171 = vunpack.c.l.b16 %v44
  %v172 = vunpack.c.l.b16 %v45
  %v173 = vunpack.c.l.b16 %v46
  %v174 = vunpack.c.l.b16 %v47
  %v175 = vunpack.c.l.b16 %v48
  %v176 = vunpack.c.l.b16 %v49
  %v177 = vunpack.c.l.b16 %v50
  %v178 = vunpack.c.l.b16 %v51
  %v179 = vunpack.c.l.b16 %v52
  %v180 = vunpack.c.l.b16 %v53
  %v181 = vunpack.c.l.b16 %v54
  %v182 = vunpack.c.l.b16 %v55
  %v183 = vunpack.c.l.b16 %v56
  %v184 = vunpack.c.l.b16 %v57
  %v185 = vunpack.c.l.b16 %v58
  %v186 = vunpack.c.l.b16 %v59
  %v187 = vunpack.c.l.b16 %v60
  %v188 = vunpack.c.l.b16 %v61
  %v189 = vunpack.c.l.b16 %v62
  %v190 = vunpack.c.l.b16 %v63
  %v191 = vpack.c.b16 %v168, %v167
  %v192 = vpack.c.b16 %v170, %v169
  %v193 = vpack.c.b16 %v172, %v171
  %v194 = vpack.c.b16 %v174, %v173
  %v195 = vpack.c.b16 %v176, %v175
  %v196 = vpack.c.b16 %v178, %v177
  %v197 = vpack.c.b16 %v180, %v179
  %v198 = vpack.c.b16 %v182, %v181
  %v199 = vpack.c.b16 %v184, %v183
  %v200 = vpack.c.b16 %v186, %v185
  %v201 = vpack.c.b16 %v188, %v187
  %v202 = vpack.c.b16 %v190, %v189
  %vm215 = vcmask 523264
  %v217 = vsel %vm215, %v120, 0
  %v220 = vsel %vm215, %v122, 0
  %v223 = vsel %vm215, %v124, 0
  %v226 = vsel %vm215, %v126, 0
  %v229 = vsel %vm215, %v128, 0
  %v232 = vsel %vm215, %v130, 0
  %v235 = vsel %vm215, %v132, 0
  %v238 = vsel %vm215, %v134, 0
  %240 = vmatprep.subr.bf16.mxu0 0
  %241 = vmatpush1.bf16.msra.mxu0 %v191
  %242 = vmatprep.subr.bf16.mxu0 0
  %243 = vmatpush1.bf16.msra.mxu0 %v192
  %244 = vmatprep.subr.bf16.mxu0 0
  %245 = vmatpush1.bf16.msra.mxu0 %v193
  %246 = vmatprep.subr.bf16.mxu0 0
  %247 = vmatpush1.bf16.msra.mxu0 %v194
  %248 = vmatprep.subr.bf16.mxu0 0
  %249 = vmatpush1.bf16.msra.mxu0 %v195
  %250 = vmatprep.subr.bf16.mxu0 0
  %251 = vmatpush1.bf16.msra.mxu0 %v196
  %252 = vmatprep.subr.bf16.mxu0 0
  %253 = vmatpush1.bf16.msra.mxu0 %v197
  %254 = vmatprep.subr.bf16.mxu0 0
  %255 = vmatpush1.bf16.msra.mxu0 %v198
  %256 = vmatprep.subr.bf16.mxu0 0
  %257 = vmatpush1.bf16.msra.mxu0 %v199
  %258 = vmatprep.subr.bf16.mxu0 0
  %259 = vmatpush1.bf16.msra.mxu0 %v200
  %260 = vmatprep.subr.bf16.mxu0 0
  %261 = vmatpush1.bf16.msra.mxu0 %v201
  %262 = vmatprep.subr.bf16.mxu0 0
  %263 = vmatpush1.bf16.msra.mxu0 %v202
  %264 = vmatprep.subr.bf16.mxu0 0
  %265 = vmatpush1.bf16.msra.mxu0 0
  %266 = vmatprep.subr.bf16.mxu0 0
  %267 = vmatpush1.bf16.msra.mxu0 0
  %268 = vmatprep.subr.bf16.mxu0 0
  %269 = vmatpush1.bf16.msra.mxu0 0
  %270 = vmatprep.subr.bf16.mxu0 0
  %271 = vmatpush1.bf16.msra.mxu0 0
  %272 = vmatprep.mubr.bf16.mxu0 %v217
  %273 = vmatmul.mubr.bf16.gmra.mrb[0].mxu0 %v119
  %v274 = vpop.f32.mrb[0].mxu0
  %v275 = vadd.f32 %v69, %v274
  %v276 = vpop.f32.mrb[0].mxu0
  %v277 = vpop.f32.mrb[0].mxu0
  %v278 = vadd.f32 %v69, %v277
  %v279 = vpop.f32.mrb[0].mxu0
  %280 = vmatprep.mubr.bf16.mxu0 %v220
  %281 = vmatmul.mubr.bf16.gmra.mrb[0].mxu0 %v121
  %v282 = vpop.f32.mrb[0].mxu0
  %v283 = vadd.f32 %v69, %v282
  %v284 = vpop.f32.mrb[0].mxu0
  %v285 = vpop.f32.mrb[0].mxu0
  %v286 = vadd.f32 %v69, %v285
  %v287 = vpop.f32.mrb[0].mxu0
  %288 = vmatprep.mubr.bf16.mxu0 %v223
  %289 = vmatmul.mubr.bf16.gmra.mrb[0].mxu0 %v123
  %v290 = vpop.f32.mrb[0].mxu0
  %v291 = vadd.f32 %v69, %v290
  %v292 = vpop.f32.mrb[0].mxu0
  %v293 = vpop.f32.mrb[0].mxu0
  %v294 = vadd.f32 %v69, %v293
  %v295 = vpop.f32.mrb[0].mxu0
  %296 = vmatprep.mubr.bf16.mxu0 %v226
  %297 = vmatmul.mubr.bf16.gmra.mrb[0].mxu0 %v125
  %v298 = vpop.f32.mrb[0].mxu0
  %v299 = vadd.f32 %v69, %v298
  %v300 = vpop.f32.mrb[0].mxu0
  %v301 = vpop.f32.mrb[0].mxu0
  %v302 = vadd.f32 %v69, %v301
  %v303 = vpop.f32.mrb[0].mxu0
  %304 = vmatprep.mubr.bf16.mxu0 %v229
  %305 = vmatmul.mubr.bf16.gmra.mrb[0].mxu0 %v127
  %v306 = vpop.f32.mrb[0].mxu0
  %v307 = vadd.f32 %v69, %v306
  %v308 = vpop.f32.mrb[0].mxu0
  %v309 = vpop.f32.mrb[0].mxu0
  %v310 = vadd.f32 %v69, %v309
  %v311 = vpop.f32.mrb[0].mxu0
  %312 = vmatprep.mubr.bf16.mxu0 %v232
  %313 = vmatmul.mubr.bf16.gmra.mrb[0].mxu0 %v129
  %v314 = vpop.f32.mrb[0].mxu0
  %v315 = vadd.f32 %v69, %v314
  %v316 = vpop.f32.mrb[0].mxu0
  %v317 = vpop.f32.mrb[0].mxu0
  %v318 = vadd.f32 %v69, %v317
  %v319 = vpop.f32.mrb[0].mxu0
  %320 = vmatprep.mubr.bf16.mxu0 %v235
  %321 = vmatmul.mubr.bf16.gmra.mrb[0].mxu0 %v131
  %v322 = vpop.f32.mrb[0].mxu0
  %v323 = vadd.f32 %v69, %v322
  %v324 = vpop.f32.mrb[0].mxu0
  %v325 = vpop.f32.mrb[0].mxu0
  %v326 = vadd.f32 %v69, %v325
  %v327 = vpop.f32.mrb[0].mxu0
  %328 = vmatprep.mubr.bf16.mxu0 %v238
  %329 = vmatmul.mubr.bf16.gmra.mrb[0].mxu0 %v133
  %v330 = vpop.f32.mrb[0].mxu0
  %v331 = vadd.f32 %v69, %v330
  %v332 = vpop.f32.mrb[0].mxu0
  %v333 = vpop.f32.mrb[0].mxu0
  %v334 = vadd.f32 %v69, %v333
  %v335 = vpop.f32.mrb[0].mxu0
  %336 = vdwg.mxu0
  %v337 = vmax.f32 %v275, 0.0
  %v338 = vmax.f32 %v278, 0.0
  %v339 = vmax.f32 %v283, 0.0
  %v340 = vmax.f32 %v286, 0.0
  %v341 = vmax.f32 %v291, 0.0
  %v342 = vmax.f32 %v294, 0.0
  %v343 = vmax.f32 %v299, 0.0
  %v344 = vmax.f32 %v302, 0.0
  %v345 = vmax.f32 %v307, 0.0
  %v346 = vmax.f32 %v310, 0.0
  %v347 = vmax.f32 %v315, 0.0
  %v348 = vmax.f32 %v318, 0.0
  %v349 = vmax.f32 %v323, 0.0
  %v350 = vmax.f32 %v326, 0.0
  %v351 = vmax.f32 %v331, 0.0
  %v352 = vmax.f32 %v334, 0.0
  %v353 = vpack.c.bf16 %v338, %v337
  %v354 = vpack.c.bf16 %v340, %v339
  %v355 = vpack.c.bf16 %v342, %v341
  %v356 = vpack.c.bf16 %v344, %v343
  %v357 = vpack.c.bf16 %v346, %v345
  %v358 = vpack.c.bf16 %v348, %v347
  %v359 = vpack.c.bf16 %v350, %v349
  %v360 = vpack.c.bf16 %v352, %v351
  %s361 = smul.u32 0, 16
  %s362 = smul.addr %s361, 4
  %s363 = scalar_lea.vmem [#allocation2], %s362
  %364 = vst [vmem:[%s363] sm:$0xf] %v353
  %v366 = vunpack.c.h.b16 %v353
  %v367 = vpack.c.b16 %v366, %v366
  %369 = vst [vmem:[%s363 + $0x4] sm:$0xf] %v367
  %370 = vst [vmem:[%s363 + $0x8] sm:$0xf] %v354
  %v372 = vunpack.c.h.b16 %v354
  %v373 = vpack.c.b16 %v372, %v372
  %375 = vst [vmem:[%s363 + $0xc] sm:$0xf] %v373
  %376 = vst [vmem:[%s363 + $0x10] sm:$0xf] %v355
  %v378 = vunpack.c.h.b16 %v355
  %v379 = vpack.c.b16 %v378, %v378
  %381 = vst [vmem:[%s363 + $0x14] sm:$0xf] %v379
  %382 = vst [vmem:[%s363 + $0x18] sm:$0xf] %v356
  %v384 = vunpack.c.h.b16 %v356
  %v385 = vpack.c.b16 %v384, %v384
  %387 = vst [vmem:[%s363 + $0x1c] sm:$0xf] %v385
  %388 = vst [vmem:[%s363 + $0x20] sm:$0xf] %v357
  %v390 = vunpack.c.h.b16 %v357
  %v391 = vpack.c.b16 %v390, %v390
  %393 = vst [vmem:[%s363 + $0x24] sm:$0xf] %v391
  %394 = vst [vmem:[%s363 + $0x28] sm:$0xf] %v358
  %v396 = vunpack.c.h.b16 %v358
  %v397 = vpack.c.b16 %v396, %v396
  %399 = vst [vmem:[%s363 + $0x2c] sm:$0xf] %v397
  %400 = vst [vmem:[%s363 + $0x30] sm:$0xf] %v359
  %v402 = vunpack.c.h.b16 %v359
  %v403 = vpack.c.b16 %v402, %v402
  %405 = vst [vmem:[%s363 + $0x34] sm:$0xf] %v403
  %406 = vst [vmem:[%s363 + $0x38] sm:$0xf] %v360
  %v408 = vunpack.c.h.b16 %v360
  %v409 = vpack.c.b16 %v408, %v408
  %411 = vst [vmem:[%s363 + $0x3c] sm:$0xf] %v409
  %v412 = vld [vmem:[#allocation2] sm:$0xff]
  %v413 = vld [vmem:[#allocation2 + $0x8] sm:$0xff]
  %v414 = vld [vmem:[#allocation2 + $0x10] sm:$0xff]
  %v415 = vld [vmem:[#allocation2 + $0x18] sm:$0xff]
  %v416 = vld [vmem:[#allocation2 + $0x20] sm:$0xff]
  %v417 = vld [vmem:[#allocation2 + $0x28] sm:$0xff]
  %v418 = vld [vmem:[#allocation2 + $0x30] sm:$0xff]
  %v419 = vld [vmem:[#allocation2 + $0x38] sm:$0xff]
  %v420 = vld [vmem:[%s3] sm:$0xf]
  %v421 = vld [vmem:[%s3 + $0x4] sm:$0xf]
  %v422 = vld [vmem:[%s3 + $0x8] sm:$0xf]
  %v423 = vld [vmem:[%s3 + $0xc] sm:$0xf]
  %v424 = vld [vmem:[%s3 + $0x10] sm:$0xf]
  %v425 = vld [vmem:[%s3 + $0x14] sm:$0xf]
  %v426 = vld [vmem:[%s3 + $0x18] sm:$0xf]
  %v427 = vld [vmem:[%s3 + $0x1c] sm:$0xf]
  %v428 = vld [vmem:[%s3 + $0x20] sm:$0xf]
  %v429 = vld [vmem:[%s3 + $0x24] sm:$0xf]
  %v430 = vld [vmem:[%s3 + $0x28] sm:$0xf]
  %v431 = vld [vmem:[%s3 + $0x2c] sm:$0xf]
  %v432 = vld [vmem:[%s3 + $0x30] sm:$0xf]
  %v433 = vld [vmem:[%s3 + $0x34] sm:$0xf]
  %v434 = vld [vmem:[%s3 + $0x38] sm:$0xf]
  %v435 = vld [vmem:[%s3 + $0x3c] sm:$0xf]
  %v436 = vld [vmem:[%s3 + $0x40] sm:$0xf]
  %v437 = vld [vmem:[%s3 + $0x44] sm:$0xf]
  %v438 = vld [vmem:[%s3 + $0x48] sm:$0xf]
  %v439 = vld [vmem:[%s3 + $0x4c] sm:$0xf]
  %v440 = vld [vmem:[%s3 + $0x50] sm:$0xf]
  %v441 = vld [vmem:[%s3 + $0x54] sm:$0xf]
  %v442 = vld [vmem:[%s3 + $0x58] sm:$0xf]
  %v443 = vld [vmem:[%s3 + $0x5c] sm:$0xf]
  %v444 = vld [vmem:[%s3 + $0x60] sm:$0xf]
  %v445 = vld [vmem:[%s3 + $0x64] sm:$0xf]
  %v446 = vld [vmem:[%s3 + $0x68] sm:$0xf]
  %v447 = vld [vmem:[%s3 + $0x6c] sm:$0xf]
  %v448 = vld [vmem:[%s3 + $0x70] sm:$0xf]
  %v449 = vld [vmem:[%s3 + $0x74] sm:$0xf]
  %v450 = vld [vmem:[%s3 + $0x78] sm:$0xf]
  %v451 = vld [vmem:[%s3 + $0x7c] sm:$0xf]
  %v452 = vld [vmem:[%s3 + $0x80] sm:$0xf]
  %v453 = vld [vmem:[%s3 + $0x84] sm:$0xf]
  %v454 = vld [vmem:[%s3 + $0x88] sm:$0xf]
  %v455 = vld [vmem:[%s3 + $0x8c] sm:$0xf]
  %v456 = vld [vmem:[%s3 + $0x90] sm:$0xf]
  %v457 = vld [vmem:[%s3 + $0x94] sm:$0xf]
  %v458 = vld [vmem:[%s3 + $0x98] sm:$0xf]
  %v459 = vld [vmem:[%s3 + $0x9c] sm:$0xf]
  %v460 = vld [vmem:[%s3 + $0xa0] sm:$0xf]
  %v461 = vld [vmem:[%s3 + $0xa4] sm:$0xf]
  %v462 = vld [vmem:[%s3 + $0xa8] sm:$0xf]
  %v463 = vld [vmem:[%s3 + $0xac] sm:$0xf]
  %v464 = vld [vmem:[%s3 + $0xb0] sm:$0xf]
  %v465 = vld [vmem:[%s3 + $0xb4] sm:$0xf]
  %v466 = vld [vmem:[%s3 + $0xb8] sm:$0xf]
  %v467 = vld [vmem:[%s3 + $0xbc] sm:$0xf]
  %v468 = vld [vmem:[%s3 + $0xc0] sm:$0xf]
  %v469 = vld [vmem:[%s3 + $0xc4] sm:$0xf]
  %v470 = vld [vmem:[%s3 + $0xc8] sm:$0xf]
  %v471 = vld [vmem:[%s3 + $0xcc] sm:$0xf]
  %v472 = vld [vmem:[%s3 + $0xd0] sm:$0xf]
  %v473 = vld [vmem:[%s3 + $0xd4] sm:$0xf]
  %v474 = vld [vmem:[%s3 + $0xd8] sm:$0xf]
  %v475 = vld [vmem:[%s3 + $0xdc] sm:$0xf]
  %v476 = vld [vmem:[%s3 + $0xe0] sm:$0xf]
  %v477 = vld [vmem:[%s3 + $0xe4] sm:$0xf]
  %v478 = vld [vmem:[%s3 + $0xe8] sm:$0xf]
  %v479 = vld [vmem:[%s3 + $0xec] sm:$0xf]
  %v480 = vld [vmem:[%s3 + $0xf0] sm:$0xf]
  %v481 = vld [vmem:[%s3 + $0xf4] sm:$0xf]
  %v482 = vld [vmem:[%s3 + $0xf8] sm:$0xf]
  %v483 = vld [vmem:[%s3 + $0xfc] sm:$0xf]
  %v484 = vld [vmem:[%s3 + $0x100] sm:$0xf]
  %v485 = vld [vmem:[%s3 + $0x104] sm:$0xf]
  %v486 = vld [vmem:[%s3 + $0x108] sm:$0xf]
  %v487 = vld [vmem:[%s3 + $0x10c] sm:$0xf]
  %v488 = vld [vmem:[%s3 + $0x110] sm:$0xf]
  %v489 = vld [vmem:[%s3 + $0x114] sm:$0xf]
  %v490 = vld [vmem:[%s3 + $0x118] sm:$0xf]
  %v491 = vld [vmem:[%s3 + $0x11c] sm:$0xf]
  %v492 = vld [vmem:[%s3 + $0x120] sm:$0xf]
  %v493 = vld [vmem:[%s3 + $0x124] sm:$0xf]
  %v494 = vld [vmem:[%s3 + $0x128] sm:$0xf]
  %v495 = vld [vmem:[%s3 + $0x12c] sm:$0xf]
  %v496 = vld [vmem:[%s3 + $0x130] sm:$0xf]
  %v497 = vld [vmem:[%s3 + $0x134] sm:$0xf]
  %v498 = vld [vmem:[%s3 + $0x138] sm:$0xf]
  %v499 = vld [vmem:[%s3 + $0x13c] sm:$0xf]
  %v500 = vld [vmem:[%s3 + $0x140] sm:$0xf]
  %v501 = vld [vmem:[%s3 + $0x144] sm:$0xf]
  %v502 = vld [vmem:[%s3 + $0x148] sm:$0xf]
  %v503 = vld [vmem:[%s3 + $0x14c] sm:$0xf]
  %v504 = vld [vmem:[%s3 + $0x150] sm:$0xf]
  %v505 = vld [vmem:[%s3 + $0x154] sm:$0xf]
  %v506 = vld [vmem:[%s3 + $0x158] sm:$0xf]
  %v507 = vld [vmem:[%s3 + $0x15c] sm:$0xf]
  %v508 = vld [vmem:[%s3 + $0x160] sm:$0xf]
  %v509 = vld [vmem:[%s3 + $0x164] sm:$0xf]
  %v510 = vld [vmem:[%s3 + $0x168] sm:$0xf]
  %v511 = vld [vmem:[%s3 + $0x16c] sm:$0xf]
  %v512 = vld [vmem:[%s3 + $0x170] sm:$0xf]
  %v513 = vld [vmem:[%s3 + $0x174] sm:$0xf]
  %v514 = vld [vmem:[%s3 + $0x178] sm:$0xf]
  %v515 = vld [vmem:[%s3 + $0x17c] sm:$0xf]
  %v516 = vld [vmem:[%s3 + $0x180] sm:$0xf]
  %v517 = vld [vmem:[%s3 + $0x184] sm:$0xf]
  %v518 = vld [vmem:[%s3 + $0x188] sm:$0xf]
  %v519 = vld [vmem:[%s3 + $0x18c] sm:$0xf]
  %v520 = vld [vmem:[%s3 + $0x190] sm:$0xf]
  %v521 = vld [vmem:[%s3 + $0x194] sm:$0xf]
  %v522 = vld [vmem:[%s3 + $0x198] sm:$0xf]
  %v523 = vld [vmem:[%s3 + $0x19c] sm:$0xf]
  %v524 = vld [vmem:[%s3 + $0x1a0] sm:$0xf]
  %v525 = vld [vmem:[%s3 + $0x1a4] sm:$0xf]
  %v526 = vld [vmem:[%s3 + $0x1a8] sm:$0xf]
  %v527 = vld [vmem:[%s3 + $0x1ac] sm:$0xf]
  %v528 = vld [vmem:[%s3 + $0x1b0] sm:$0xf]
  %v529 = vld [vmem:[%s3 + $0x1b4] sm:$0xf]
  %v530 = vld [vmem:[%s3 + $0x1b8] sm:$0xf]
  %v531 = vld [vmem:[%s3 + $0x1bc] sm:$0xf]
  %v532 = vld [vmem:[%s3 + $0x1c0] sm:$0xf]
  %v533 = vld [vmem:[%s3 + $0x1c4] sm:$0xf]
  %v534 = vld [vmem:[%s3 + $0x1c8] sm:$0xf]
  %v535 = vld [vmem:[%s3 + $0x1cc] sm:$0xf]
  %v536 = vld [vmem:[%s3 + $0x1d0] sm:$0xf]
  %v537 = vld [vmem:[%s3 + $0x1d4] sm:$0xf]
  %v538 = vld [vmem:[%s3 + $0x1d8] sm:$0xf]
  %v539 = vld [vmem:[%s3 + $0x1dc] sm:$0xf]
  %v540 = vld [vmem:[%s3 + $0x1e0] sm:$0xf]
  %v541 = vld [vmem:[%s3 + $0x1e4] sm:$0xf]
  %v542 = vld [vmem:[%s3 + $0x1e8] sm:$0xf]
  %v543 = vld [vmem:[%s3 + $0x1ec] sm:$0xf]
  %v544 = vld [vmem:[%s3 + $0x1f0] sm:$0xf]
  %v545 = vld [vmem:[%s3 + $0x1f4] sm:$0xf]
  %v546 = vld [vmem:[%s3 + $0x1f8] sm:$0xf]
  %v547 = vld [vmem:[%s3 + $0x1fc] sm:$0xf]
  %v548 = vld [vmem:[%s3 + $0x200] sm:$0xf]
  %v549 = vld [vmem:[%s3 + $0x204] sm:$0xf]
  %v550 = vld [vmem:[%s3 + $0x208] sm:$0xf]
  %v551 = vld [vmem:[%s3 + $0x20c] sm:$0xf]
  %v552 = vld [vmem:[%s3 + $0x210] sm:$0xf]
  %v553 = vld [vmem:[%s3 + $0x214] sm:$0xf]
  %v554 = vld [vmem:[%s3 + $0x218] sm:$0xf]
  %v555 = vld [vmem:[%s3 + $0x21c] sm:$0xf]
  %v556 = vld [vmem:[%s3 + $0x220] sm:$0xf]
  %v557 = vld [vmem:[%s3 + $0x224] sm:$0xf]
  %v558 = vld [vmem:[%s3 + $0x228] sm:$0xf]
  %v559 = vld [vmem:[%s3 + $0x22c] sm:$0xf]
  %v560 = vld [vmem:[%s3 + $0x230] sm:$0xf]
  %v561 = vld [vmem:[%s3 + $0x234] sm:$0xf]
  %v562 = vld [vmem:[%s3 + $0x238] sm:$0xf]
  %v563 = vld [vmem:[%s3 + $0x23c] sm:$0xf]
  %v564 = vld [vmem:[%s3 + $0x240] sm:$0xf]
  %v565 = vld [vmem:[%s3 + $0x244] sm:$0xf]
  %v566 = vld [vmem:[%s3 + $0x248] sm:$0xf]
  %v567 = vld [vmem:[%s3 + $0x24c] sm:$0xf]
  %v568 = vld [vmem:[%s3 + $0x250] sm:$0xf]
  %v569 = vld [vmem:[%s3 + $0x254] sm:$0xf]
  %v570 = vld [vmem:[%s3 + $0x258] sm:$0xf]
  %v571 = vld [vmem:[%s3 + $0x25c] sm:$0xf]
  %v572 = vld [vmem:[%s3 + $0x260] sm:$0xf]
  %v573 = vld [vmem:[%s3 + $0x264] sm:$0xf]
  %v574 = vld [vmem:[%s3 + $0x268] sm:$0xf]
  %v575 = vld [vmem:[%s3 + $0x26c] sm:$0xf]
  %v576 = vld [vmem:[%s3 + $0x270] sm:$0xf]
  %v577 = vld [vmem:[%s3 + $0x274] sm:$0xf]
  %v578 = vld [vmem:[%s3 + $0x278] sm:$0xf]
  %v579 = vld [vmem:[%s3 + $0x27c] sm:$0xf]
  %v580 = vld [vmem:[%s3 + $0x280] sm:$0xf]
  %v581 = vld [vmem:[%s3 + $0x284] sm:$0xf]
  %v582 = vld [vmem:[%s3 + $0x288] sm:$0xf]
  %v583 = vld [vmem:[%s3 + $0x28c] sm:$0xf]
  %v584 = vld [vmem:[%s3 + $0x290] sm:$0xf]
  %v585 = vld [vmem:[%s3 + $0x294] sm:$0xf]
  %v586 = vld [vmem:[%s3 + $0x298] sm:$0xf]
  %v587 = vld [vmem:[%s3 + $0x29c] sm:$0xf]
  %v588 = vld [vmem:[%s3 + $0x2a0] sm:$0xf]
  %v589 = vld [vmem:[%s3 + $0x2a4] sm:$0xf]
  %v590 = vld [vmem:[%s3 + $0x2a8] sm:$0xf]
  %v591 = vld [vmem:[%s3 + $0x2ac] sm:$0xf]
  %v592 = vld [vmem:[%s3 + $0x2b0] sm:$0xf]
  %v593 = vld [vmem:[%s3 + $0x2b4] sm:$0xf]
  %v594 = vld [vmem:[%s3 + $0x2b8] sm:$0xf]
  %v595 = vld [vmem:[%s3 + $0x2bc] sm:$0xf]
  %v596 = vld [vmem:[%s3 + $0x2c0] sm:$0xf]
  %v597 = vld [vmem:[%s3 + $0x2c4] sm:$0xf]
  %v598 = vld [vmem:[%s3 + $0x2c8] sm:$0xf]
  %v599 = vld [vmem:[%s3 + $0x2cc] sm:$0xf]
  %v600 = vld [vmem:[%s3 + $0x2d0] sm:$0xf]
  %v601 = vld [vmem:[%s3 + $0x2d4] sm:$0xf]
  %v602 = vld [vmem:[%s3 + $0x2d8] sm:$0xf]
  %v603 = vld [vmem:[%s3 + $0x2dc] sm:$0xf]
  %v604 = vld [vmem:[%s3 + $0x2e0] sm:$0xf]
  %v605 = vld [vmem:[%s3 + $0x2e4] sm:$0xf]
  %v606 = vld [vmem:[%s3 + $0x2e8] sm:$0xf]
  %v607 = vld [vmem:[%s3 + $0x2ec] sm:$0xf]
  %v608 = vld [vmem:[%s3 + $0x2f0] sm:$0xf]
  %v609 = vld [vmem:[%s3 + $0x2f4] sm:$0xf]
  %v610 = vld [vmem:[%s3 + $0x2f8] sm:$0xf]
  %v611 = vld [vmem:[%s3 + $0x2fc] sm:$0xf]
  %v612 = vld [vmem:[%s3 + $0x300] sm:$0xf]
  %v613 = vld [vmem:[%s3 + $0x304] sm:$0xf]
  %v614 = vld [vmem:[%s3 + $0x308] sm:$0xf]
  %v615 = vld [vmem:[%s3 + $0x30c] sm:$0xf]
  %v616 = vld [vmem:[%s3 + $0x310] sm:$0xf]
  %v617 = vld [vmem:[%s3 + $0x314] sm:$0xf]
  %v618 = vld [vmem:[%s3 + $0x318] sm:$0xf]
  %v619 = vld [vmem:[%s3 + $0x31c] sm:$0xf]
  %v620 = vld [vmem:[%s3 + $0x320] sm:$0xf]
  %v621 = vld [vmem:[%s3 + $0x324] sm:$0xf]
  %v622 = vld [vmem:[%s3 + $0x328] sm:$0xf]
  %v623 = vld [vmem:[%s3 + $0x32c] sm:$0xf]
  %v624 = vld [vmem:[%s3 + $0x330] sm:$0xf]
  %v625 = vld [vmem:[%s3 + $0x334] sm:$0xf]
  %v626 = vld [vmem:[%s3 + $0x338] sm:$0xf]
  %v627 = vld [vmem:[%s3 + $0x33c] sm:$0xf]
  %v628 = vld [vmem:[%s3 + $0x340] sm:$0xf]
  %v629 = vld [vmem:[%s3 + $0x344] sm:$0xf]
  %v630 = vld [vmem:[%s3 + $0x348] sm:$0xf]
  %v631 = vld [vmem:[%s3 + $0x34c] sm:$0xf]
  %v632 = vld [vmem:[%s3 + $0x350] sm:$0xf]
  %v633 = vld [vmem:[%s3 + $0x354] sm:$0xf]
  %v634 = vld [vmem:[%s3 + $0x358] sm:$0xf]
  %v635 = vld [vmem:[%s3 + $0x35c] sm:$0xf]
  %v636 = vld [vmem:[%s3 + $0x360] sm:$0xf]
  %v637 = vld [vmem:[%s3 + $0x364] sm:$0xf]
  %v638 = vld [vmem:[%s3 + $0x368] sm:$0xf]
  %v639 = vld [vmem:[%s3 + $0x36c] sm:$0xf]
  %v640 = vld [vmem:[%s3 + $0x370] sm:$0xf]
  %v641 = vld [vmem:[%s3 + $0x374] sm:$0xf]
  %v642 = vld [vmem:[%s3 + $0x378] sm:$0xf]
  %v643 = vld [vmem:[%s3 + $0x37c] sm:$0xf]
  %v644 = vld [vmem:[%s3 + $0x380] sm:$0xf]
  %v645 = vld [vmem:[%s3 + $0x384] sm:$0xf]
  %v646 = vld [vmem:[%s3 + $0x388] sm:$0xf]
  %v647 = vld [vmem:[%s3 + $0x38c] sm:$0xf]
  %v648 = vld [vmem:[%s3 + $0x390] sm:$0xf]
  %v649 = vld [vmem:[%s3 + $0x394] sm:$0xf]
  %v650 = vld [vmem:[%s3 + $0x398] sm:$0xf]
  %v651 = vld [vmem:[%s3 + $0x39c] sm:$0xf]
  %v652 = vld [vmem:[%s3 + $0x3a0] sm:$0xf]
  %v653 = vld [vmem:[%s3 + $0x3a4] sm:$0xf]
  %v654 = vld [vmem:[%s3 + $0x3a8] sm:$0xf]
  %v655 = vld [vmem:[%s3 + $0x3ac] sm:$0xf]
  %v656 = vld [vmem:[%s3 + $0x3b0] sm:$0xf]
  %v657 = vld [vmem:[%s3 + $0x3b4] sm:$0xf]
  %v658 = vld [vmem:[%s3 + $0x3b8] sm:$0xf]
  %v659 = vld [vmem:[%s3 + $0x3bc] sm:$0xf]
  %v660 = vld [vmem:[%s3 + $0x3c0] sm:$0xf]
  %v661 = vld [vmem:[%s3 + $0x3c4] sm:$0xf]
  %v662 = vld [vmem:[%s3 + $0x3c8] sm:$0xf]
  %v663 = vld [vmem:[%s3 + $0x3cc] sm:$0xf]
  %v664 = vld [vmem:[%s3 + $0x3d0] sm:$0xf]
  %v665 = vld [vmem:[%s3 + $0x3d4] sm:$0xf]
  %v666 = vld [vmem:[%s3 + $0x3d8] sm:$0xf]
  %v667 = vld [vmem:[%s3 + $0x3dc] sm:$0xf]
  %v668 = vld [vmem:[%s3 + $0x3e0] sm:$0xf]
  %v669 = vld [vmem:[%s3 + $0x3e4] sm:$0xf]
  %v670 = vld [vmem:[%s3 + $0x3e8] sm:$0xf]
  %v671 = vld [vmem:[%s3 + $0x3ec] sm:$0xf]
  %v672 = vld [vmem:[%s3 + $0x3f0] sm:$0xf]
  %v673 = vld [vmem:[%s3 + $0x3f4] sm:$0xf]
  %v674 = vld [vmem:[%s3 + $0x3f8] sm:$0xf]
  %v675 = vld [vmem:[%s3 + $0x3fc] sm:$0xf]
  %v676 = vld [vmem:[%s4] sm:$0x1]
  %v678 = vlaneseq
  %v679 = vshrl.u32 %v678, 7
  %v680 = vsub.s32 0, %v679
  %v681 = vrot.slane %v676, %v680
  %v691 = vunpack.c.l.b16 %v412
  %v692 = vunpack.c.h.b16 %v412
  %v693 = vunpack.c.l.b16 %v413
  %v694 = vunpack.c.h.b16 %v413
  %v695 = vunpack.c.l.b16 %v414
  %v696 = vunpack.c.h.b16 %v414
  %v697 = vunpack.c.l.b16 %v415
  %v698 = vunpack.c.h.b16 %v415
  %v699 = vunpack.c.l.b16 %v416
  %v700 = vunpack.c.h.b16 %v416
  %v701 = vunpack.c.l.b16 %v417
  %v702 = vunpack.c.h.b16 %v417
  %v703 = vunpack.c.l.b16 %v418
  %v704 = vunpack.c.h.b16 %v418
  %v705 = vunpack.c.l.b16 %v419
  %v706 = vunpack.c.h.b16 %v419
  %v707 = vpack.c.b16 %v691, %v691
  %v708 = vpack.c.b16 %v692, %v692
  %v709 = vpack.c.b16 %v693, %v693
  %v710 = vpack.c.b16 %v694, %v694
  %v711 = vpack.c.b16 %v695, %v695
  %v712 = vpack.c.b16 %v696, %v696
  %v713 = vpack.c.b16 %v697, %v697
  %v714 = vpack.c.b16 %v698, %v698
  %v715 = vpack.c.b16 %v699, %v699
  %v716 = vpack.c.b16 %v700, %v700
  %v717 = vpack.c.b16 %v701, %v701
  %v718 = vpack.c.b16 %v702, %v702
  %v719 = vpack.c.b16 %v703, %v703
  %v720 = vpack.c.b16 %v704, %v704
  %v721 = vpack.c.b16 %v705, %v705
  %v722 = vpack.c.b16 %v706, %v706
  %v995 = vunpack.c.l.b16 %v420
  %v996 = vunpack.c.l.b16 %v421
  %v997 = vunpack.c.l.b16 %v422
  %v998 = vunpack.c.l.b16 %v423
  %v999 = vunpack.c.l.b16 %v424
  %v1000 = vunpack.c.l.b16 %v425
  %v1001 = vunpack.c.l.b16 %v426
  %v1002 = vunpack.c.l.b16 %v427
  %v1003 = vunpack.c.l.b16 %v428
  %v1004 = vunpack.c.l.b16 %v429
  %v1005 = vunpack.c.l.b16 %v430
  %v1006 = vunpack.c.l.b16 %v431
  %v1007 = vunpack.c.l.b16 %v432
  %v1008 = vunpack.c.l.b16 %v433
  %v1009 = vunpack.c.l.b16 %v434
  %v1010 = vunpack.c.l.b16 %v435
  %v1011 = vunpack.c.l.b16 %v436
  %v1012 = vunpack.c.l.b16 %v437
  %v1013 = vunpack.c.l.b16 %v438
  %v1014 = vunpack.c.l.b16 %v439
  %v1015 = vunpack.c.l.b16 %v440
  %v1016 = vunpack.c.l.b16 %v441
  %v1017 = vunpack.c.l.b16 %v442
  %v1018 = vunpack.c.l.b16 %v443
  %v1019 = vunpack.c.l.b16 %v444
  %v1020 = vunpack.c.l.b16 %v445
  %v1021 = vunpack.c.l.b16 %v446
  %v1022 = vunpack.c.l.b16 %v447
  %v1023 = vunpack.c.l.b16 %v448
  %v1024 = vunpack.c.l.b16 %v449
  %v1025 = vunpack.c.l.b16 %v450
  %v1026 = vunpack.c.l.b16 %v451
  %v1027 = vunpack.c.l.b16 %v452
  %v1028 = vunpack.c.l.b16 %v453
  %v1029 = vunpack.c.l.b16 %v454
  %v1030 = vunpack.c.l.b16 %v455
  %v1031 = vunpack.c.l.b16 %v456
  %v1032 = vunpack.c.l.b16 %v457
  %v1033 = vunpack.c.l.b16 %v458
  %v1034 = vunpack.c.l.b16 %v459
  %v1035 = vunpack.c.l.b16 %v460
  %v1036 = vunpack.c.l.b16 %v461
  %v1037 = vunpack.c.l.b16 %v462
  %v1038 = vunpack.c.l.b16 %v463
  %v1039 = vunpack.c.l.b16 %v464
  %v1040 = vunpack.c.l.b16 %v465
  %v1041 = vunpack.c.l.b16 %v466
  %v1042 = vunpack.c.l.b16 %v467
  %v1043 = vunpack.c.l.b16 %v468
  %v1044 = vunpack.c.l.b16 %v469
  %v1045 = vunpack.c.l.b16 %v470
  %v1046 = vunpack.c.l.b16 %v471
  %v1047 = vunpack.c.l.b16 %v472
  %v1048 = vunpack.c.l.b16 %v473
  %v1049 = vunpack.c.l.b16 %v474
  %v1050 = vunpack.c.l.b16 %v475
  %v1051 = vunpack.c.l.b16 %v476
  %v1052 = vunpack.c.l.b16 %v477
  %v1053 = vunpack.c.l.b16 %v478
  %v1054 = vunpack.c.l.b16 %v479
  %v1055 = vunpack.c.l.b16 %v480
  %v1056 = vunpack.c.l.b16 %v481
  %v1057 = vunpack.c.l.b16 %v482
  %v1058 = vunpack.c.l.b16 %v483
  %v1059 = vunpack.c.l.b16 %v484
  %v1060 = vunpack.c.l.b16 %v485
  %v1061 = vunpack.c.l.b16 %v486
  %v1062 = vunpack.c.l.b16 %v487
  %v1063 = vunpack.c.l.b16 %v488
  %v1064 = vunpack.c.l.b16 %v489
  %v1065 = vunpack.c.l.b16 %v490
  %v1066 = vunpack.c.l.b16 %v491
  %v1067 = vunpack.c.l.b16 %v492
  %v1068 = vunpack.c.l.b16 %v493
  %v1069 = vunpack.c.l.b16 %v494
  %v1070 = vunpack.c.l.b16 %v495
  %v1071 = vunpack.c.l.b16 %v496
  %v1072 = vunpack.c.l.b16 %v497
  %v1073 = vunpack.c.l.b16 %v498
  %v1074 = vunpack.c.l.b16 %v499
  %v1075 = vunpack.c.l.b16 %v500
  %v1076 = vunpack.c.l.b16 %v501
  %v1077 = vunpack.c.l.b16 %v502
  %v1078 = vunpack.c.l.b16 %v503
  %v1079 = vunpack.c.l.b16 %v504
  %v1080 = vunpack.c.l.b16 %v505
  %v1081 = vunpack.c.l.b16 %v506
  %v1082 = vunpack.c.l.b16 %v507
  %v1083 = vunpack.c.l.b16 %v508
  %v1084 = vunpack.c.l.b16 %v509
  %v1085 = vunpack.c.l.b16 %v510
  %v1086 = vunpack.c.l.b16 %v511
  %v1087 = vunpack.c.l.b16 %v512
  %v1088 = vunpack.c.l.b16 %v513
  %v1089 = vunpack.c.l.b16 %v514
  %v1090 = vunpack.c.l.b16 %v515
  %v1091 = vunpack.c.l.b16 %v516
  %v1092 = vunpack.c.l.b16 %v517
  %v1093 = vunpack.c.l.b16 %v518
  %v1094 = vunpack.c.l.b16 %v519
  %v1095 = vunpack.c.l.b16 %v520
  %v1096 = vunpack.c.l.b16 %v521
  %v1097 = vunpack.c.l.b16 %v522
  %v1098 = vunpack.c.l.b16 %v523
  %v1099 = vunpack.c.l.b16 %v524
  %v1100 = vunpack.c.l.b16 %v525
  %v1101 = vunpack.c.l.b16 %v526
  %v1102 = vunpack.c.l.b16 %v527
  %v1103 = vunpack.c.l.b16 %v528
  %v1104 = vunpack.c.l.b16 %v529
  %v1105 = vunpack.c.l.b16 %v530
  %v1106 = vunpack.c.l.b16 %v531
  %v1107 = vunpack.c.l.b16 %v532
  %v1108 = vunpack.c.l.b16 %v533
  %v1109 = vunpack.c.l.b16 %v534
  %v1110 = vunpack.c.l.b16 %v535
  %v1111 = vunpack.c.l.b16 %v536
  %v1112 = vunpack.c.l.b16 %v537
  %v1113 = vunpack.c.l.b16 %v538
  %v1114 = vunpack.c.l.b16 %v539
  %v1115 = vunpack.c.l.b16 %v540
  %v1116 = vunpack.c.l.b16 %v541
  %v1117 = vunpack.c.l.b16 %v542
  %v1118 = vunpack.c.l.b16 %v543
  %v1119 = vunpack.c.l.b16 %v544
  %v1120 = vunpack.c.l.b16 %v545
  %v1121 = vunpack.c.l.b16 %v546
  %v1122 = vunpack.c.l.b16 %v547
  %v1123 = vunpack.c.l.b16 %v548
  %v1124 = vunpack.c.l.b16 %v549
  %v1125 = vunpack.c.l.b16 %v550
  %v1126 = vunpack.c.l.b16 %v551
  %v1127 = vunpack.c.l.b16 %v552
  %v1128 = vunpack.c.l.b16 %v553
  %v1129 = vunpack.c.l.b16 %v554
  %v1130 = vunpack.c.l.b16 %v555
  %v1131 = vunpack.c.l.b16 %v556
  %v1132 = vunpack.c.l.b16 %v557
  %v1133 = vunpack.c.l.b16 %v558
  %v1134 = vunpack.c.l.b16 %v559
  %v1135 = vunpack.c.l.b16 %v560
  %v1136 = vunpack.c.l.b16 %v561
  %v1137 = vunpack.c.l.b16 %v562
  %v1138 = vunpack.c.l.b16 %v563
  %v1139 = vunpack.c.l.b16 %v564
  %v1140 = vunpack.c.l.b16 %v565
  %v1141 = vunpack.c.l.b16 %v566
  %v1142 = vunpack.c.l.b16 %v567
  %v1143 = vunpack.c.l.b16 %v568
  %v1144 = vunpack.c.l.b16 %v569
  %v1145 = vunpack.c.l.b16 %v570
  %v1146 = vunpack.c.l.b16 %v571
  %v1147 = vunpack.c.l.b16 %v572
  %v1148 = vunpack.c.l.b16 %v573
  %v1149 = vunpack.c.l.b16 %v574
  %v1150 = vunpack.c.l.b16 %v575
  %v1151 = vunpack.c.l.b16 %v576
  %v1152 = vunpack.c.l.b16 %v577
  %v1153 = vunpack.c.l.b16 %v578
  %v1154 = vunpack.c.l.b16 %v579
  %v1155 = vunpack.c.l.b16 %v580
  %v1156 = vunpack.c.l.b16 %v581
  %v1157 = vunpack.c.l.b16 %v582
  %v1158 = vunpack.c.l.b16 %v583
  %v1159 = vunpack.c.l.b16 %v584
  %v1160 = vunpack.c.l.b16 %v585
  %v1161 = vunpack.c.l.b16 %v586
  %v1162 = vunpack.c.l.b16 %v587
  %v1163 = vunpack.c.l.b16 %v588
  %v1164 = vunpack.c.l.b16 %v589
  %v1165 = vunpack.c.l.b16 %v590
  %v1166 = vunpack.c.l.b16 %v591
  %v1167 = vunpack.c.l.b16 %v592
  %v1168 = vunpack.c.l.b16 %v593
  %v1169 = vunpack.c.l.b16 %v594
  %v1170 = vunpack.c.l.b16 %v595
  %v1171 = vunpack.c.l.b16 %v596
  %v1172 = vunpack.c.l.b16 %v597
  %v1173 = vunpack.c.l.b16 %v598
  %v1174 = vunpack.c.l.b16 %v599
  %v1175 = vunpack.c.l.b16 %v600
  %v1176 = vunpack.c.l.b16 %v601
  %v1177 = vunpack.c.l.b16 %v602
  %v1178 = vunpack.c.l.b16 %v603
  %v1179 = vunpack.c.l.b16 %v604
  %v1180 = vunpack.c.l.b16 %v605
  %v1181 = vunpack.c.l.b16 %v606
  %v1182 = vunpack.c.l.b16 %v607
  %v1183 = vunpack.c.l.b16 %v608
  %v1184 = vunpack.c.l.b16 %v609
  %v1185 = vunpack.c.l.b16 %v610
  %v1186 = vunpack.c.l.b16 %v611
  %v1187 = vunpack.c.l.b16 %v612
  %v1188 = vunpack.c.l.b16 %v613
  %v1189 = vunpack.c.l.b16 %v614
  %v1190 = vunpack.c.l.b16 %v615
  %v1191 = vunpack.c.l.b16 %v616
  %v1192 = vunpack.c.l.b16 %v617
  %v1193 = vunpack.c.l.b16 %v618
  %v1194 = vunpack.c.l.b16 %v619
  %v1195 = vunpack.c.l.b16 %v620
  %v1196 = vunpack.c.l.b16 %v621
  %v1197 = vunpack.c.l.b16 %v622
  %v1198 = vunpack.c.l.b16 %v623
  %v1199 = vunpack.c.l.b16 %v624
  %v1200 = vunpack.c.l.b16 %v625
  %v1201 = vunpack.c.l.b16 %v626
  %v1202 = vunpack.c.l.b16 %v627
  %v1203 = vunpack.c.l.b16 %v628
  %v1204 = vunpack.c.l.b16 %v629
  %v1205 = vunpack.c.l.b16 %v630
  %v1206 = vunpack.c.l.b16 %v631
  %v1207 = vunpack.c.l.b16 %v632
  %v1208 = vunpack.c.l.b16 %v633
  %v1209 = vunpack.c.l.b16 %v634
  %v1210 = vunpack.c.l.b16 %v635
  %v1211 = vunpack.c.l.b16 %v636
  %v1212 = vunpack.c.l.b16 %v637
  %v1213 = vunpack.c.l.b16 %v638
  %v1214 = vunpack.c.l.b16 %v639
  %v1215 = vunpack.c.l.b16 %v640
  %v1216 = vunpack.c.l.b16 %v641
  %v1217 = vunpack.c.l.b16 %v642
  %v1218 = vunpack.c.l.b16 %v643
  %v1219 = vunpack.c.l.b16 %v644
  %v1220 = vunpack.c.l.b16 %v645
  %v1221 = vunpack.c.l.b16 %v646
  %v1222 = vunpack.c.l.b16 %v647
  %v1223 = vunpack.c.l.b16 %v648
  %v1224 = vunpack.c.l.b16 %v649
  %v1225 = vunpack.c.l.b16 %v650
  %v1226 = vunpack.c.l.b16 %v651
  %v1227 = vunpack.c.l.b16 %v652
  %v1228 = vunpack.c.l.b16 %v653
  %v1229 = vunpack.c.l.b16 %v654
  %v1230 = vunpack.c.l.b16 %v655
  %v1231 = vunpack.c.l.b16 %v656
  %v1232 = vunpack.c.l.b16 %v657
  %v1233 = vunpack.c.l.b16 %v658
  %v1234 = vunpack.c.l.b16 %v659
  %v1235 = vunpack.c.l.b16 %v660
  %v1236 = vunpack.c.l.b16 %v661
  %v1237 = vunpack.c.l.b16 %v662
  %v1238 = vunpack.c.l.b16 %v663
  %v1239 = vunpack.c.l.b16 %v664
  %v1240 = vunpack.c.l.b16 %v665
  %v1241 = vunpack.c.l.b16 %v666
  %v1242 = vunpack.c.l.b16 %v667
  %v1243 = vunpack.c.l.b16 %v668
  %v1244 = vunpack.c.l.b16 %v669
  %v1245 = vunpack.c.l.b16 %v670
  %v1246 = vunpack.c.l.b16 %v671
  %v1247 = vunpack.c.l.b16 %v672
  %v1248 = vunpack.c.l.b16 %v673
  %v1249 = vunpack.c.l.b16 %v674
  %v1250 = vunpack.c.l.b16 %v675
  %v1251 = vpack.c.b16 %v996, %v995
  %v1252 = vpack.c.b16 %v998, %v997
  %v1253 = vpack.c.b16 %v1000, %v999
  %v1254 = vpack.c.b16 %v1002, %v1001
  %v1255 = vpack.c.b16 %v1004, %v1003
  %v1256 = vpack.c.b16 %v1006, %v1005
  %v1257 = vpack.c.b16 %v1008, %v1007
  %v1258 = vpack.c.b16 %v1010, %v1009
  %v1259 = vpack.c.b16 %v1012, %v1011
  %v1260 = vpack.c.b16 %v1014, %v1013
  %v1261 = vpack.c.b16 %v1016, %v1015
  %v1262 = vpack.c.b16 %v1018, %v1017
  %v1263 = vpack.c.b16 %v1020, %v1019
  %v1264 = vpack.c.b16 %v1022, %v1021
  %v1265 = vpack.c.b16 %v1024, %v1023
  %v1266 = vpack.c.b16 %v1026, %v1025
  %v1267 = vpack.c.b16 %v1028, %v1027
  %v1268 = vpack.c.b16 %v1030, %v1029
  %v1269 = vpack.c.b16 %v1032, %v1031
  %v1270 = vpack.c.b16 %v1034, %v1033
  %v1271 = vpack.c.b16 %v1036, %v1035
  %v1272 = vpack.c.b16 %v1038, %v1037
  %v1273 = vpack.c.b16 %v1040, %v1039
  %v1274 = vpack.c.b16 %v1042, %v1041
  %v1275 = vpack.c.b16 %v1044, %v1043
  %v1276 = vpack.c.b16 %v1046, %v1045
  %v1277 = vpack.c.b16 %v1048, %v1047
  %v1278 = vpack.c.b16 %v1050, %v1049
  %v1279 = vpack.c.b16 %v1052, %v1051
  %v1280 = vpack.c.b16 %v1054, %v1053
  %v1281 = vpack.c.b16 %v1056, %v1055
  %v1282 = vpack.c.b16 %v1058, %v1057
  %v1283 = vpack.c.b16 %v1060, %v1059
  %v1284 = vpack.c.b16 %v1062, %v1061
  %v1285 = vpack.c.b16 %v1064, %v1063
  %v1286 = vpack.c.b16 %v1066, %v1065
  %v1287 = vpack.c.b16 %v1068, %v1067
  %v1288 = vpack.c.b16 %v1070, %v1069
  %v1289 = vpack.c.b16 %v1072, %v1071
  %v1290 = vpack.c.b16 %v1074, %v1073
  %v1291 = vpack.c.b16 %v1076, %v1075
  %v1292 = vpack.c.b16 %v1078, %v1077
  %v1293 = vpack.c.b16 %v1080, %v1079
  %v1294 = vpack.c.b16 %v1082, %v1081
  %v1295 = vpack.c.b16 %v1084, %v1083
  %v1296 = vpack.c.b16 %v1086, %v1085
  %v1297 = vpack.c.b16 %v1088, %v1087
  %v1298 = vpack.c.b16 %v1090, %v1089
  %v1299 = vpack.c.b16 %v1092, %v1091
  %v1300 = vpack.c.b16 %v1094, %v1093
  %v1301 = vpack.c.b16 %v1096, %v1095
  %v1302 = vpack.c.b16 %v1098, %v1097
  %v1303 = vpack.c.b16 %v1100, %v1099
  %v1304 = vpack.c.b16 %v1102, %v1101
  %v1305 = vpack.c.b16 %v1104, %v1103
  %v1306 = vpack.c.b16 %v1106, %v1105
  %v1307 = vpack.c.b16 %v1108, %v1107
  %v1308 = vpack.c.b16 %v1110, %v1109
  %v1309 = vpack.c.b16 %v1112, %v1111
  %v1310 = vpack.c.b16 %v1114, %v1113
  %v1311 = vpack.c.b16 %v1116, %v1115
  %v1312 = vpack.c.b16 %v1118, %v1117
  %v1313 = vpack.c.b16 %v1120, %v1119
  %v1314 = vpack.c.b16 %v1122, %v1121
  %v1315 = vpack.c.b16 %v1124, %v1123
  %v1316 = vpack.c.b16 %v1126, %v1125
  %v1317 = vpack.c.b16 %v1128, %v1127
  %v1318 = vpack.c.b16 %v1130, %v1129
  %v1319 = vpack.c.b16 %v1132, %v1131
  %v1320 = vpack.c.b16 %v1134, %v1133
  %v1321 = vpack.c.b16 %v1136, %v1135
  %v1322 = vpack.c.b16 %v1138, %v1137
  %v1323 = vpack.c.b16 %v1140, %v1139
  %v1324 = vpack.c.b16 %v1142, %v1141
  %v1325 = vpack.c.b16 %v1144, %v1143
  %v1326 = vpack.c.b16 %v1146, %v1145
  %v1327 = vpack.c.b16 %v1148, %v1147
  %v1328 = vpack.c.b16 %v1150, %v1149
  %v1329 = vpack.c.b16 %v1152, %v1151
  %v1330 = vpack.c.b16 %v1154, %v1153
  %v1331 = vpack.c.b16 %v1156, %v1155
  %v1332 = vpack.c.b16 %v1158, %v1157
  %v1333 = vpack.c.b16 %v1160, %v1159
  %v1334 = vpack.c.b16 %v1162, %v1161
  %v1335 = vpack.c.b16 %v1164, %v1163
  %v1336 = vpack.c.b16 %v1166, %v1165
  %v1337 = vpack.c.b16 %v1168, %v1167
  %v1338 = vpack.c.b16 %v1170, %v1169
  %v1339 = vpack.c.b16 %v1172, %v1171
  %v1340 = vpack.c.b16 %v1174, %v1173
  %v1341 = vpack.c.b16 %v1176, %v1175
  %v1342 = vpack.c.b16 %v1178, %v1177
  %v1343 = vpack.c.b16 %v1180, %v1179
  %v1344 = vpack.c.b16 %v1182, %v1181
  %v1345 = vpack.c.b16 %v1184, %v1183
  %v1346 = vpack.c.b16 %v1186, %v1185
  %v1347 = vpack.c.b16 %v1188, %v1187
  %v1348 = vpack.c.b16 %v1190, %v1189
  %v1349 = vpack.c.b16 %v1192, %v1191
  %v1350 = vpack.c.b16 %v1194, %v1193
  %v1351 = vpack.c.b16 %v1196, %v1195
  %v1352 = vpack.c.b16 %v1198, %v1197
  %v1353 = vpack.c.b16 %v1200, %v1199
  %v1354 = vpack.c.b16 %v1202, %v1201
  %v1355 = vpack.c.b16 %v1204, %v1203
  %v1356 = vpack.c.b16 %v1206, %v1205
  %v1357 = vpack.c.b16 %v1208, %v1207
  %v1358 = vpack.c.b16 %v1210, %v1209
  %v1359 = vpack.c.b16 %v1212, %v1211
  %v1360 = vpack.c.b16 %v1214, %v1213
  %v1361 = vpack.c.b16 %v1216, %v1215
  %v1362 = vpack.c.b16 %v1218, %v1217
  %v1363 = vpack.c.b16 %v1220, %v1219
  %v1364 = vpack.c.b16 %v1222, %v1221
  %v1365 = vpack.c.b16 %v1224, %v1223
  %v1366 = vpack.c.b16 %v1226, %v1225
  %v1367 = vpack.c.b16 %v1228, %v1227
  %v1368 = vpack.c.b16 %v1230, %v1229
  %v1369 = vpack.c.b16 %v1232, %v1231
  %v1370 = vpack.c.b16 %v1234, %v1233
  %v1371 = vpack.c.b16 %v1236, %v1235
  %v1372 = vpack.c.b16 %v1238, %v1237
  %v1373 = vpack.c.b16 %v1240, %v1239
  %v1374 = vpack.c.b16 %v1242, %v1241
  %v1375 = vpack.c.b16 %v1244, %v1243
  %v1376 = vpack.c.b16 %v1246, %v1245
  %v1377 = vpack.c.b16 %v1248, %v1247
  %v1378 = vpack.c.b16 %v1250, %v1249
  %1507 = vmatprep.subr.bf16.mxu0 0
  %1508 = vmatpush1.bf16.msra.mxu0 %v1251
  %1509 = vmatprep.subr.bf16.mxu0 0
  %1510 = vmatpush1.bf16.msra.mxu0 %v1252
  %1511 = vmatprep.subr.bf16.mxu0 0
  %1512 = vmatpush1.bf16.msra.mxu0 %v1253
  %1513 = vmatprep.subr.bf16.mxu0 0
  %1514 = vmatpush1.bf16.msra.mxu0 %v1254
  %1515 = vmatprep.subr.bf16.mxu0 0
  %1516 = vmatpush1.bf16.msra.mxu0 %v1255
  %1517 = vmatprep.subr.bf16.mxu0 0
  %1518 = vmatpush1.bf16.msra.mxu0 %v1256
  %1519 = vmatprep.subr.bf16.mxu0 0
  %1520 = vmatpush1.bf16.msra.mxu0 %v1257
  %1521 = vmatprep.subr.bf16.mxu0 0
  %1522 = vmatpush1.bf16.msra.mxu0 %v1258
  %1523 = vmatprep.subr.bf16.mxu0 0
  %1524 = vmatpush1.bf16.msra.mxu0 %v1259
  %1525 = vmatprep.subr.bf16.mxu0 0
  %1526 = vmatpush1.bf16.msra.mxu0 %v1260
  %1527 = vmatprep.subr.bf16.mxu0 0
  %1528 = vmatpush1.bf16.msra.mxu0 %v1261
  %1529 = vmatprep.subr.bf16.mxu0 0
  %1530 = vmatpush1.bf16.msra.mxu0 %v1262
  %1531 = vmatprep.subr.bf16.mxu0 0
  %1532 = vmatpush1.bf16.msra.mxu0 %v1263
  %1533 = vmatprep.subr.bf16.mxu0 0
  %1534 = vmatpush1.bf16.msra.mxu0 %v1264
  %1535 = vmatprep.subr.bf16.mxu0 0
  %1536 = vmatpush1.bf16.msra.mxu0 %v1265
  %1537 = vmatprep.subr.bf16.mxu0 0
  %1538 = vmatpush1.bf16.msra.mxu0 %v1266
  %1539 = vmatprep.mubr.bf16.mxu0 %v708
  %1540 = vmatmul.mubr.bf16.gmra.mrb[0].mxu0 %v707
  %v1541 = vpop.f32.mrb[0].mxu0
  %v1542 = vadd.f32 %v681, %v1541
  %v1543 = vpop.f32.mrb[0].mxu0
  %v1544 = vpop.f32.mrb[0].mxu0
  %v1545 = vpop.f32.mrb[0].mxu0
  %1546 = vdwg.mxu0
  %1547 = vmatprep.subr.bf16.mxu0 0
  %1548 = vmatpush1.bf16.msra.mxu0 %v1267
  %1549 = vmatprep.subr.bf16.mxu0 0
  %1550 = vmatpush1.bf16.msra.mxu0 %v1268
  %1551 = vmatprep.subr.bf16.mxu0 0
  %1552 = vmatpush1.bf16.msra.mxu0 %v1269
  %1553 = vmatprep.subr.bf16.mxu0 0
  %1554 = vmatpush1.bf16.msra.mxu0 %v1270
  %1555 = vmatprep.subr.bf16.mxu0 0
  %1556 = vmatpush1.bf16.msra.mxu0 %v1271
  %1557 = vmatprep.subr.bf16.mxu0 0
  %1558 = vmatpush1.bf16.msra.mxu0 %v1272
  %1559 = vmatprep.subr.bf16.mxu0 0
  %1560 = vmatpush1.bf16.msra.mxu0 %v1273
  %1561 = vmatprep.subr.bf16.mxu0 0
  %1562 = vmatpush1.bf16.msra.mxu0 %v1274
  %1563 = vmatprep.subr.bf16.mxu0 0
  %1564 = vmatpush1.bf16.msra.mxu0 %v1275
  %1565 = vmatprep.subr.bf16.mxu0 0
  %1566 = vmatpush1.bf16.msra.mxu0 %v1276
  %1567 = vmatprep.subr.bf16.mxu0 0
  %1568 = vmatpush1.bf16.msra.mxu0 %v1277
  %1569 = vmatprep.subr.bf16.mxu0 0
  %1570 = vmatpush1.bf16.msra.mxu0 %v1278
  %1571 = vmatprep.subr.bf16.mxu0 0
  %1572 = vmatpush1.bf16.msra.mxu0 %v1279
  %1573 = vmatprep.subr.bf16.mxu0 0
  %1574 = vmatpush1.bf16.msra.mxu0 %v1280
  %1575 = vmatprep.subr.bf16.mxu0 0
  %1576 = vmatpush1.bf16.msra.mxu0 %v1281
  %1577 = vmatprep.subr.bf16.mxu0 0
  %1578 = vmatpush1.bf16.msra.mxu0 %v1282
  %1579 = vmatprep.mubr.bf16.mxu0 %v710
  %1580 = vmatmul.mubr.bf16.gmra.mrb[0].mxu0 %v709
  %v1581 = vpop.f32.mrb[0].mxu0
  %v1582 = vadd.f32 %v1542, %v1581
  %v1583 = vpop.f32.mrb[0].mxu0
  %v1584 = vpop.f32.mrb[0].mxu0
  %v1585 = vpop.f32.mrb[0].mxu0
  %1586 = vdwg.mxu0
  %1587 = vmatprep.subr.bf16.mxu0 0
  %1588 = vmatpush1.bf16.msra.mxu0 %v1283
  %1589 = vmatprep.subr.bf16.mxu0 0
  %1590 = vmatpush1.bf16.msra.mxu0 %v1284
  %1591 = vmatprep.subr.bf16.mxu0 0
  %1592 = vmatpush1.bf16.msra.mxu0 %v1285
  %1593 = vmatprep.subr.bf16.mxu0 0
  %1594 = vmatpush1.bf16.msra.mxu0 %v1286
  %1595 = vmatprep.subr.bf16.mxu0 0
  %1596 = vmatpush1.bf16.msra.mxu0 %v1287
  %1597 = vmatprep.subr.bf16.mxu0 0
  %1598 = vmatpush1.bf16.msra.mxu0 %v1288
  %1599 = vmatprep.subr.bf16.mxu0 0
  %1600 = vmatpush1.bf16.msra.mxu0 %v1289
  %1601 = vmatprep.subr.bf16.mxu0 0
  %1602 = vmatpush1.bf16.msra.mxu0 %v1290
  %1603 = vmatprep.subr.bf16.mxu0 0
  %1604 = vmatpush1.bf16.msra.mxu0 %v1291
  %1605 = vmatprep.subr.bf16.mxu0 0
  %1606 = vmatpush1.bf16.msra.mxu0 %v1292
  %1607 = vmatprep.subr.bf16.mxu0 0
  %1608 = vmatpush1.bf16.msra.mxu0 %v1293
  %1609 = vmatprep.subr.bf16.mxu0 0
  %1610 = vmatpush1.bf16.msra.mxu0 %v1294
  %1611 = vmatprep.subr.bf16.mxu0 0
  %1612 = vmatpush1.bf16.msra.mxu0 %v1295
  %1613 = vmatprep.subr.bf16.mxu0 0
  %1614 = vmatpush1.bf16.msra.mxu0 %v1296
  %1615 = vmatprep.subr.bf16.mxu0 0
  %1616 = vmatpush1.bf16.msra.mxu0 %v1297
  %1617 = vmatprep.subr.bf16.mxu0 0
  %1618 = vmatpush1.bf16.msra.mxu0 %v1298
  %1619 = vmatprep.mubr.bf16.mxu0 %v712
  %1620 = vmatmul.mubr.bf16.gmra.mrb[0].mxu0 %v711
  %v1621 = vpop.f32.mrb[0].mxu0
  %v1622 = vadd.f32 %v1582, %v1621
  %v1623 = vpop.f32.mrb[0].mxu0
  %v1624 = vpop.f32.mrb[0].mxu0
  %v1625 = vpop.f32.mrb[0].mxu0
  %1626 = vdwg.mxu0
  %1627 = vmatprep.subr.bf16.mxu0 0
  %1628 = vmatpush1.bf16.msra.mxu0 %v1299
  %1629 = vmatprep.subr.bf16.mxu0 0
  %1630 = vmatpush1.bf16.msra.mxu0 %v1300
  %1631 = vmatprep.subr.bf16.mxu0 0
  %1632 = vmatpush1.bf16.msra.mxu0 %v1301
  %1633 = vmatprep.subr.bf16.mxu0 0
  %1634 = vmatpush1.bf16.msra.mxu0 %v1302
  %1635 = vmatprep.subr.bf16.mxu0 0
  %1636 = vmatpush1.bf16.msra.mxu0 %v1303
  %1637 = vmatprep.subr.bf16.mxu0 0
  %1638 = vmatpush1.bf16.msra.mxu0 %v1304
  %1639 = vmatprep.subr.bf16.mxu0 0
  %1640 = vmatpush1.bf16.msra.mxu0 %v1305
  %1641 = vmatprep.subr.bf16.mxu0 0
  %1642 = vmatpush1.bf16.msra.mxu0 %v1306
  %1643 = vmatprep.subr.bf16.mxu0 0
  %1644 = vmatpush1.bf16.msra.mxu0 %v1307
  %1645 = vmatprep.subr.bf16.mxu0 0
  %1646 = vmatpush1.bf16.msra.mxu0 %v1308
  %1647 = vmatprep.subr.bf16.mxu0 0
  %1648 = vmatpush1.bf16.msra.mxu0 %v1309
  %1649 = vmatprep.subr.bf16.mxu0 0
  %1650 = vmatpush1.bf16.msra.mxu0 %v1310
  %1651 = vmatprep.subr.bf16.mxu0 0
  %1652 = vmatpush1.bf16.msra.mxu0 %v1311
  %1653 = vmatprep.subr.bf16.mxu0 0
  %1654 = vmatpush1.bf16.msra.mxu0 %v1312
  %1655 = vmatprep.subr.bf16.mxu0 0
  %1656 = vmatpush1.bf16.msra.mxu0 %v1313
  %1657 = vmatprep.subr.bf16.mxu0 0
  %1658 = vmatpush1.bf16.msra.mxu0 %v1314
  %1659 = vmatprep.mubr.bf16.mxu0 %v714
  %1660 = vmatmul.mubr.bf16.gmra.mrb[0].mxu0 %v713
  %v1661 = vpop.f32.mrb[0].mxu0
  %v1662 = vadd.f32 %v1622, %v1661
  %v1663 = vpop.f32.mrb[0].mxu0
  %v1664 = vpop.f32.mrb[0].mxu0
  %v1665 = vpop.f32.mrb[0].mxu0
  %1666 = vdwg.mxu0
  %1667 = vmatprep.subr.bf16.mxu0 0
  %1668 = vmatpush1.bf16.msra.mxu0 %v1315
  %1669 = vmatprep.subr.bf16.mxu0 0
  %1670 = vmatpush1.bf16.msra.mxu0 %v1316
  %1671 = vmatprep.subr.bf16.mxu0 0
  %1672 = vmatpush1.bf16.msra.mxu0 %v1317
  %1673 = vmatprep.subr.bf16.mxu0 0
  %1674 = vmatpush1.bf16.msra.mxu0 %v1318
  %1675 = vmatprep.subr.bf16.mxu0 0
  %1676 = vmatpush1.bf16.msra.mxu0 %v1319
  %1677 = vmatprep.subr.bf16.mxu0 0
  %1678 = vmatpush1.bf16.msra.mxu0 %v1320
  %1679 = vmatprep.subr.bf16.mxu0 0
  %1680 = vmatpush1.bf16.msra.mxu0 %v1321
  %1681 = vmatprep.subr.bf16.mxu0 0
  %1682 = vmatpush1.bf16.msra.mxu0 %v1322
  %1683 = vmatprep.subr.bf16.mxu0 0
  %1684 = vmatpush1.bf16.msra.mxu0 %v1323
  %1685 = vmatprep.subr.bf16.mxu0 0
  %1686 = vmatpush1.bf16.msra.mxu0 %v1324
  %1687 = vmatprep.subr.bf16.mxu0 0
  %1688 = vmatpush1.bf16.msra.mxu0 %v1325
  %1689 = vmatprep.subr.bf16.mxu0 0
  %1690 = vmatpush1.bf16.msra.mxu0 %v1326
  %1691 = vmatprep.subr.bf16.mxu0 0
  %1692 = vmatpush1.bf16.msra.mxu0 %v1327
  %1693 = vmatprep.subr.bf16.mxu0 0
  %1694 = vmatpush1.bf16.msra.mxu0 %v1328
  %1695 = vmatprep.subr.bf16.mxu0 0
  %1696 = vmatpush1.bf16.msra.mxu0 %v1329
  %1697 = vmatprep.subr.bf16.mxu0 0
  %1698 = vmatpush1.bf16.msra.mxu0 %v1330
  %1699 = vmatprep.mubr.bf16.mxu0 %v716
  %1700 = vmatmul.mubr.bf16.gmra.mrb[0].mxu0 %v715
  %v1701 = vpop.f32.mrb[0].mxu0
  %v1702 = vadd.f32 %v1662, %v1701
  %v1703 = vpop.f32.mrb[0].mxu0
  %v1704 = vpop.f32.mrb[0].mxu0
  %v1705 = vpop.f32.mrb[0].mxu0
  %1706 = vdwg.mxu0
  %1707 = vmatprep.subr.bf16.mxu0 0
  %1708 = vmatpush1.bf16.msra.mxu0 %v1331
  %1709 = vmatprep.subr.bf16.mxu0 0
  %1710 = vmatpush1.bf16.msra.mxu0 %v1332
  %1711 = vmatprep.subr.bf16.mxu0 0
  %1712 = vmatpush1.bf16.msra.mxu0 %v1333
  %1713 = vmatprep.subr.bf16.mxu0 0
  %1714 = vmatpush1.bf16.msra.mxu0 %v1334
  %1715 = vmatprep.subr.bf16.mxu0 0
  %1716 = vmatpush1.bf16.msra.mxu0 %v1335
  %1717 = vmatprep.subr.bf16.mxu0 0
  %1718 = vmatpush1.bf16.msra.mxu0 %v1336
  %1719 = vmatprep.subr.bf16.mxu0 0
  %1720 = vmatpush1.bf16.msra.mxu0 %v1337
  %1721 = vmatprep.subr.bf16.mxu0 0
  %1722 = vmatpush1.bf16.msra.mxu0 %v1338
  %1723 = vmatprep.subr.bf16.mxu0 0
  %1724 = vmatpush1.bf16.msra.mxu0 %v1339
  %1725 = vmatprep.subr.bf16.mxu0 0
  %1726 = vmatpush1.bf16.msra.mxu0 %v1340
  %1727 = vmatprep.subr.bf16.mxu0 0
  %1728 = vmatpush1.bf16.msra.mxu0 %v1341
  %1729 = vmatprep.subr.bf16.mxu0 0
  %1730 = vmatpush1.bf16.msra.mxu0 %v1342
  %1731 = vmatprep.subr.bf16.mxu0 0
  %1732 = vmatpush1.bf16.msra.mxu0 %v1343
  %1733 = vmatprep.subr.bf16.mxu0 0
  %1734 = vmatpush1.bf16.msra.mxu0 %v1344
  %1735 = vmatprep.subr.bf16.mxu0 0
  %1736 = vmatpush1.bf16.msra.mxu0 %v1345
  %1737 = vmatprep.subr.bf16.mxu0 0
  %1738 = vmatpush1.bf16.msra.mxu0 %v1346
  %1739 = vmatprep.mubr.bf16.mxu0 %v718
  %1740 = vmatmul.mubr.bf16.gmra.mrb[0].mxu0 %v717
  %v1741 = vpop.f32.mrb[0].mxu0
  %v1742 = vadd.f32 %v1702, %v1741
  %v1743 = vpop.f32.mrb[0].mxu0
  %v1744 = vpop.f32.mrb[0].mxu0
  %v1745 = vpop.f32.mrb[0].mxu0
  %1746 = vdwg.mxu0
  %1747 = vmatprep.subr.bf16.mxu0 0
  %1748 = vmatpush1.bf16.msra.mxu0 %v1347
  %1749 = vmatprep.subr.bf16.mxu0 0
  %1750 = vmatpush1.bf16.msra.mxu0 %v1348
  %1751 = vmatprep.subr.bf16.mxu0 0
  %1752 = vmatpush1.bf16.msra.mxu0 %v1349
  %1753 = vmatprep.subr.bf16.mxu0 0
  %1754 = vmatpush1.bf16.msra.mxu0 %v1350
  %1755 = vmatprep.subr.bf16.mxu0 0
  %1756 = vmatpush1.bf16.msra.mxu0 %v1351
  %1757 = vmatprep.subr.bf16.mxu0 0
  %1758 = vmatpush1.bf16.msra.mxu0 %v1352
  %1759 = vmatprep.subr.bf16.mxu0 0
  %1760 = vmatpush1.bf16.msra.mxu0 %v1353
  %1761 = vmatprep.subr.bf16.mxu0 0
  %1762 = vmatpush1.bf16.msra.mxu0 %v1354
  %1763 = vmatprep.subr.bf16.mxu0 0
  %1764 = vmatpush1.bf16.msra.mxu0 %v1355
  %1765 = vmatprep.subr.bf16.mxu0 0
  %1766 = vmatpush1.bf16.msra.mxu0 %v1356
  %1767 = vmatprep.subr.bf16.mxu0 0
  %1768 = vmatpush1.bf16.msra.mxu0 %v1357
  %1769 = vmatprep.subr.bf16.mxu0 0
  %1770 = vmatpush1.bf16.msra.mxu0 %v1358
  %1771 = vmatprep.subr.bf16.mxu0 0
  %1772 = vmatpush1.bf16.msra.mxu0 %v1359
  %1773 = vmatprep.subr.bf16.mxu0 0
  %1774 = vmatpush1.bf16.msra.mxu0 %v1360
  %1775 = vmatprep.subr.bf16.mxu0 0
  %1776 = vmatpush1.bf16.msra.mxu0 %v1361
  %1777 = vmatprep.subr.bf16.mxu0 0
  %1778 = vmatpush1.bf16.msra.mxu0 %v1362
  %1779 = vmatprep.mubr.bf16.mxu0 %v720
  %1780 = vmatmul.mubr.bf16.gmra.mrb[0].mxu0 %v719
  %v1781 = vpop.f32.mrb[0].mxu0
  %v1782 = vadd.f32 %v1742, %v1781
  %v1783 = vpop.f32.mrb[0].mxu0
  %v1784 = vpop.f32.mrb[0].mxu0
  %v1785 = vpop.f32.mrb[0].mxu0
  %1786 = vdwg.mxu0
  %1787 = vmatprep.subr.bf16.mxu0 0
  %1788 = vmatpush1.bf16.msra.mxu0 %v1363
  %1789 = vmatprep.subr.bf16.mxu0 0
  %1790 = vmatpush1.bf16.msra.mxu0 %v1364
  %1791 = vmatprep.subr.bf16.mxu0 0
  %1792 = vmatpush1.bf16.msra.mxu0 %v1365
  %1793 = vmatprep.subr.bf16.mxu0 0
  %1794 = vmatpush1.bf16.msra.mxu0 %v1366
  %1795 = vmatprep.subr.bf16.mxu0 0
  %1796 = vmatpush1.bf16.msra.mxu0 %v1367
  %1797 = vmatprep.subr.bf16.mxu0 0
  %1798 = vmatpush1.bf16.msra.mxu0 %v1368
  %1799 = vmatprep.subr.bf16.mxu0 0
  %1800 = vmatpush1.bf16.msra.mxu0 %v1369
  %1801 = vmatprep.subr.bf16.mxu0 0
  %1802 = vmatpush1.bf16.msra.mxu0 %v1370
  %1803 = vmatprep.subr.bf16.mxu0 0
  %1804 = vmatpush1.bf16.msra.mxu0 %v1371
  %1805 = vmatprep.subr.bf16.mxu0 0
  %1806 = vmatpush1.bf16.msra.mxu0 %v1372
  %1807 = vmatprep.subr.bf16.mxu0 0
  %1808 = vmatpush1.bf16.msra.mxu0 %v1373
  %1809 = vmatprep.subr.bf16.mxu0 0
  %1810 = vmatpush1.bf16.msra.mxu0 %v1374
  %1811 = vmatprep.subr.bf16.mxu0 0
  %1812 = vmatpush1.bf16.msra.mxu0 %v1375
  %1813 = vmatprep.subr.bf16.mxu0 0
  %1814 = vmatpush1.bf16.msra.mxu0 %v1376
  %1815 = vmatprep.subr.bf16.mxu0 0
  %1816 = vmatpush1.bf16.msra.mxu0 %v1377
  %1817 = vmatprep.subr.bf16.mxu0 0
  %1818 = vmatpush1.bf16.msra.mxu0 %v1378
  %1819 = vmatprep.mubr.bf16.mxu0 %v722
  %1820 = vmatmul.mubr.bf16.gmra.mrb[0].mxu0 %v721
  %v1821 = vpop.f32.mrb[0].mxu0
  %v1822 = vadd.f32 %v1782, %v1821
  %v1823 = vpop.f32.mrb[0].mxu0
  %v1824 = vpop.f32.mrb[0].mxu0
  %v1825 = vpop.f32.mrb[0].mxu0
  %1826 = vdwg.mxu0
  %1827 = vst [vmem:[%s5] sm:$0xff] %v1822
  // Predicated region
  $region22: #{_forward_impl.1} parent=0 // pred_check
    _
  $region23: #{_forward_impl.1} parent=0 // pred_check_branch
    %1829 = sbr.rel (0) target = $region25
  $region24: #{_forward_impl.1} parent=0 // pred_region
    _
  $region25: #{_forward_impl.1} parent=0 // pred_fallthru
    _
  // Predicated region
  $region26: #{_forward_impl.1} parent=0 // pred_check
    _
  $region27: #{_forward_impl.1} parent=0 // pred_check_branch
    %1831 = sbr.rel (0) target = $region29
  $region28: #{_forward_impl.1} parent=0 // pred_region
    _
  $region29: #{_forward_impl.1} parent=0 // pred_fallthru
    _

</llo_original>
